<compile_context>
chip_gen: v7x
topology: tpu7x:2x2x1
jax: 0.10.0
libtpu: 0.0.40
codegen_flags: <defaults>
</compile_context>

<pallas_src>
import functools

import jax
import jax.numpy as jnp
from jax.experimental import pallas as pl
from jax.experimental.pallas import tpu as pltpu


def _sigmoid(z):
    # tanh-based logistic -> guaranteed EUP lowering inside the kernel.
    return 0.5 * (jnp.tanh(0.5 * z) + 1.0)


def local_rnn_layer_kernel(x_ref, gamma_ref, beta_ref, wc_ref, bc_ref,
                           wih_ref, whh_ref, bias_ref, o_ref, gx_pad_ref,
                           *, eps, ksize, pad_top, approx_recip):
    L, d = x_ref.shape
    half = d // 2
    mxu_dtype = wc_ref.dtype

    x = x_ref[...].astype(jnp.float32)                                  # [L, D]

    # ---- LayerNorm (torch semantics: unbiased std, eps added to std) ----
    mean = jnp.mean(x, axis=-1, keepdims=True)
    cen = x - mean
    var_unb = jnp.sum(cen * cen, axis=-1, keepdims=True) * (1.0 / (d - 1))
    inv = pl.reciprocal(jnp.sqrt(var_unb) + eps, approx=approx_recip)   # [L,1] on EUP
    normed = gamma_ref[...] * (cen * inv) + beta_ref[...]               # [L, D]

    # ---- GLU(dim=-1): a * sigmoid(b) ----
    g = normed[:, :half] * _sigmoid(normed[:, half:])                   # [L, D/2]

    # ---- Conv1d(kernel_size=1)  ==  g @ Wc + bc ----
    y = jnp.dot(g.astype(mxu_dtype), wc_ref[...],
                preferred_element_type=jnp.float32) + bc_ref[...]       # [L, D]

    # ---- windowed LSTM ----
    # Input projection (+ fused bias) for ALL window steps at once; per-step inputs
    # are row-shifted views of this, read from a bias-padded VMEM scratch.  The left
    # pad rows carry exactly the bias, which is the gate pre-activation of a zero
    # input, so the per-step bias add disappears.
    bias = bias_ref[...]                                                # [1, 4D]
    gx = jnp.dot(y.astype(mxu_dtype), wih_ref[...],
                 preferred_element_type=jnp.float32) + bias             # [L, 4D]

    if pad_top > 0:
        # Written every grid step (scratch is per-core under "parallel" sharding).
        gx_pad_ref[0:pad_top, :] = jnp.broadcast_to(bias, (pad_top, 4 * d))
    gx_pad_ref[pad_top:pad_top + L, :] = gx

    whh = whh_ref[...]                                                  # [D, 4D]
    h = jnp.zeros((L, d), jnp.float32)
    c = jnp.zeros((L, d), jnp.float32)
    for k in range(ksize):                       # ksize is small & static -> unrolled
        shift = ksize - 1 - k
        gates = gx_pad_ref[pad_top - shift:pad_top - shift + L, :]      # [L, 4D]
        if k > 0:                                # h == 0 on the first step
            gates = gates + jnp.dot(h.astype(mxu_dtype), whh,
                                    preferred_element_type=jnp.float32)
        i_g = _sigmoid(gates[:, 0 * d:1 * d])
        f_g = _sigmoid(gates[:, 1 * d:2 * d])
        g_g = jnp.tanh(gates[:, 2 * d:3 * d])
        o_g = _sigmoid(gates[:, 3 * d:4 * d])
        c = f_g * c + i_g * g_g
        h = o_g * jnp.tanh(c)

    # ---- residual (dropout == identity in eval) ----
    o_ref[...] = (x + h).astype(o_ref.dtype)


def local_rnn_layer(x, gamma, beta, wc, bc, w_ih, w_hh, b_ih, b_hh, *,
                    ksize, eps=1e-6, mxu_dtype=jnp.bfloat16, approx_recip=True):
    """x: [B,L,D]; gamma/beta: [D]; wc: [D/2,D]; bc: [D];
    w_ih/w_hh: [4D,D] (torch LSTM layout, gate order i,f,g,o); b_ih/b_hh: [4D]."""
    B, L, D = x.shape
    assert D % 2 == 0
    f32 = jnp.float32

    # Kernel-layout parameters. MXU weights pre-cast (bf16 by default); small f32 vectors.
    wc_k = wc.astype(mxu_dtype)                      # [D/2, D]
    wih_k = jnp.transpose(w_ih).astype(mxu_dtype)    # [D, 4D]
    whh_k = jnp.transpose(w_hh).astype(mxu_dtype)    # [D, 4D]
    gamma_k = gamma.reshape(1, D).astype(f32)
    beta_k = beta.reshape(1, D).astype(f32)
    bc_k = bc.reshape(1, D).astype(f32)
    bias_k = (b_ih + b_hh).reshape(1, 4 * D).astype(f32)

    pad_top = 8 * (-(-(ksize - 1) // 8))             # pad rows, sublane (8) aligned

    kernel = functools.partial(local_rnn_layer_kernel, eps=eps, ksize=ksize,
                               pad_top=pad_top, approx_recip=approx_recip)

    # VMEM budget: resident weights + double-buffered in/out tiles + scratch + slack.
    w_bytes = sum(int(a.size) * a.dtype.itemsize
                  for a in (wc_k, wih_k, whh_k, gamma_k, beta_k, bc_k, bias_k))
    act_bytes = 2 * 2 * L * D * x.dtype.itemsize
    scratch_bytes = (pad_top + L) * 4 * D * 4
    vmem_limit = int(min(max(w_bytes + act_bytes + scratch_bytes + (8 << 20),
                             32 << 20), 64 << 20))

    flops = 2 * B * L * D * (D // 2 + 4 * D * ksize)
    transcendentals = B * L * (D // 2 + ksize * 5 * D)
    bytes_accessed = 2 * B * L * D * x.dtype.itemsize + w_bytes

    grid_spec = pltpu.PrefetchScalarGridSpec(
        num_scalar_prefetch=0,
        grid=(B,),
        in_specs=[
            pl.BlockSpec((None, L, D), lambda b: (b, 0, 0)),     # x  (per-batch tile)
            pl.BlockSpec((1, D), lambda b: (0, 0)),              # gamma   (resident)
            pl.BlockSpec((1, D), lambda b: (0, 0)),              # beta    (resident)
            pl.BlockSpec((D // 2, D), lambda b: (0, 0)),         # Wc      (resident)
            pl.BlockSpec((1, D), lambda b: (0, 0)),              # bc      (resident)
            pl.BlockSpec((D, 4 * D), lambda b: (0, 0)),          # W_ih^T  (resident)
            pl.BlockSpec((D, 4 * D), lambda b: (0, 0)),          # W_hh^T  (resident)
            pl.BlockSpec((1, 4 * D), lambda b: (0, 0)),          # b_ih + b_hh (resident)
        ],
        out_specs=pl.BlockSpec((None, L, D), lambda b: (b, 0, 0)),
        scratch_shapes=[pltpu.VMEM((pad_top + L, 4 * D), jnp.float32)],
    )

    return pl.pallas_call(
        kernel,
        out_shape=jax.ShapeDtypeStruct((B, L, D), x.dtype),
        grid_spec=grid_spec,
        compiler_params=pltpu.CompilerParams(
            dimension_semantics=("parallel",),
            vmem_limit_bytes=vmem_limit),
        cost_estimate=pl.CostEstimate(flops=int(flops),
                                      transcendentals=int(transcendentals),
                                      bytes_accessed=int(bytes_accessed)),
    )(x, gamma_k, beta_k, wc_k, bc_k, wih_k, whh_k, bias_k)


def reference(x, gamma, beta, wc, bc, w_ih, w_hh, b_ih, b_hh, *, ksize, eps=1e-6):
    """Pure-JAX f32 reference matching the PyTorch LocalRNNLayer forward (eval)."""
    B, L, D = x.shape
    hp = jax.lax.Precision.HIGHEST
    # LayerNorm (torch: unbiased std, eps added to std)
    mean = jnp.mean(x, axis=-1, keepdims=True)
    var = jnp.sum((x - mean) ** 2, axis=-1, keepdims=True) / (D - 1)
    std = jnp.sqrt(var)
    n = gamma * (x - mean) / (std + eps) + beta
    # GLU
    g = n[..., :D // 2] * jax.nn.sigmoid(n[..., D // 2:])
    # Conv1d kernel_size=1
    y = jnp.einsum("blk,kd->bld", g, wc, precision=hp) + bc
    # get_K: zero-pad ksize-1 rows on the left, gather windows
    ypad = jnp.concatenate([jnp.zeros((B, ksize - 1, D), y.dtype), y], axis=1)
    win = jnp.arange(L)[:, None] + jnp.arange(ksize)[None, :]
    seq = ypad[:, win, :].reshape(B * L, ksize, D)
    # LSTM (torch gate order i,f,g,o), zero initial state, take last hidden

    def cell(carry, xt):
        h, c = carry
        gates = (jnp.dot(xt, w_ih.T, precision=hp) + b_ih
                 + jnp.dot(h, w_hh.T, precision=hp) + b_hh)
        i = jax.nn.sigmoid(gates[:, 0 * D:1 * D])
        f = jax.nn.sigmoid(gates[:, 1 * D:2 * D])
        gg = jnp.tanh(gates[:, 2 * D:3 * D])
        o = jax.nn.sigmoid(gates[:, 3 * D:4 * D])
        c = f * c + i * gg
        h = o * jnp.tanh(c)
        return (h, c), None

    h0 = jnp.zeros((B * L, D), jnp.float32)
    c0 = jnp.zeros((B * L, D), jnp.float32)
    (h, _), _ = jax.lax.scan(cell, (h0, c0), jnp.swapaxes(seq, 0, 1))
    return x + h.reshape(B, L, D)


if __name__ == "__main__":
    # Original module hard-codes D=512 (Conv1d 256->512); D=256 keeps the demo small
    # while staying lane-dense (D/2 and all gate slices are multiples of 128).
    B, L, D, ksize = 2, 8, 256, 3
    half = D // 2

    key = jax.random.PRNGKey(0)
    ks = jax.random.split(key, 9)
    x = jax.random.normal(ks[0], (B, L, D), jnp.float32)
    gamma = 1.0 + 0.1 * jax.random.normal(ks[1], (D,), jnp.float32)
    beta = 0.1 * jax.random.normal(ks[2], (D,), jnp.float32)

    lim_c = 1.0 / (half ** 0.5)      # torch Conv1d/LSTM default init bounds
    wc = jax.random.uniform(ks[3], (half, D), jnp.float32, -lim_c, lim_c)
    bc = jax.random.uniform(ks[4], (D,), jnp.float32, -lim_c, lim_c)
    lim_r = 1.0 / (D ** 0.5)
    w_ih = jax.random.uniform(ks[5], (4 * D, D), jnp.float32, -lim_r, lim_r)
    w_hh = jax.random.uniform(ks[6], (4 * D, D), jnp.float32, -lim_r, lim_r)
    b_ih = jax.random.uniform(ks[7], (4 * D,), jnp.float32, -lim_r, lim_r)
    b_hh = jax.random.uniform(ks[8], (4 * D,), jnp.float32, -lim_r, lim_r)

    ref = reference(x, gamma, beta, wc, bc, w_ih, w_hh, b_ih, b_hh, ksize=ksize)

    # f32-MXU / exact-reciprocal path: semantics check (only accumulation order and
    # MXU f32-pass precision differ from the HIGHEST-precision reference).
    out_f32 = jax.block_until_ready(
        local_rnn_layer(x, gamma, beta, wc, bc, w_ih, w_hh, b_ih, b_hh,
                        ksize=ksize, mxu_dtype=jnp.float32, approx_recip=False))
    assert out_f32.shape == (B, L, D)
    err32 = float(jnp.max(jnp.abs(out_f32 - ref)))
    assert jnp.allclose(out_f32, ref, atol=3e-2, rtol=3e-2), f"f32 path max err {err32}"

    # Default perf path (bf16 MXU + EUP approx reciprocal).
    out = jax.block_until_ready(
        local_rnn_layer(x, gamma, beta, wc, bc, w_ih, w_hh, b_ih, b_hh, ksize=ksize))
    assert out.shape == (B, L, D)
    errbf = float(jnp.max(jnp.abs(out - ref)))
    assert jnp.allclose(out, ref, atol=8e-2, rtol=8e-2), f"bf16 path max err {errbf}"

    print("KERNEL_OK")
</pallas_src>

<mosaic_0001>
module attributes {stable_mosaic.version = 11 : i64} {
  func.func @local_rnn_layer_kernel(%arg0: i32, %arg1: memref<1x8x256xf32, #tpu.memory_space<vmem>>, %arg2: memref<1x256xf32, #tpu.memory_space<vmem>>, %arg3: memref<1x256xf32, #tpu.memory_space<vmem>>, %arg4: memref<128x256xf32, #tpu.memory_space<vmem>>, %arg5: memref<1x256xf32, #tpu.memory_space<vmem>>, %arg6: memref<256x1024xf32, #tpu.memory_space<vmem>>, %arg7: memref<256x1024xf32, #tpu.memory_space<vmem>>, %arg8: memref<1x1024xf32, #tpu.memory_space<vmem>>, %arg9: memref<1x8x256xf32, #tpu.memory_space<vmem>>, %arg10: memref<16x1024xf32, #tpu.memory_space<vmem>>) attributes {dimension_semantics = [#tpu.dimension_semantics<parallel>], iteration_bounds = array<i64: 2>, scalar_prefetch = 0 : i64, scratch_operands = 1 : i64, tpu.core_type = #tpu.core_type<tc>, window_params = [{transform_indices = @transform_0, window_bounds = array<i64: 1, 8, 256>}, {pipeline_mode = #tpu.pipeline_mode<synchronous>, transform_indices = @transform_1, window_bounds = array<i64: 1, 256>}, {pipeline_mode = #tpu.pipeline_mode<synchronous>, transform_indices = @transform_2, window_bounds = array<i64: 1, 256>}, {pipeline_mode = #tpu.pipeline_mode<synchronous>, transform_indices = @transform_3, window_bounds = array<i64: 128, 256>}, {pipeline_mode = #tpu.pipeline_mode<synchronous>, transform_indices = @transform_4, window_bounds = array<i64: 1, 256>}, {pipeline_mode = #tpu.pipeline_mode<synchronous>, transform_indices = @transform_5, window_bounds = array<i64: 256, 1024>}, {pipeline_mode = #tpu.pipeline_mode<synchronous>, transform_indices = @transform_6, window_bounds = array<i64: 256, 1024>}, {pipeline_mode = #tpu.pipeline_mode<synchronous>, transform_indices = @transform_7, window_bounds = array<i64: 1, 1024>}, {transform_indices = @transform_8, window_bounds = array<i64: 1, 8, 256>}]} {
    %c0 = arith.constant 0 : index
    %c0_0 = arith.constant 0 : index
    %c0_1 = arith.constant 0 : index
    %0 = vector.load %arg1[%c0, %c0_0, %c0_1] : memref<1x8x256xf32, #tpu.memory_space<vmem>>, vector<1x8x256xf32>
    %1 = vector.shape_cast %0 : vector<1x8x256xf32> to vector<8x256xf32>
    %cst = arith.constant dense<0.000000e+00> : vector<8xf32>
    %2 = vector.multi_reduction <add>, %1, %cst [1] : vector<8x256xf32> to vector<8xf32>
    %3 = vector.shape_cast %2 : vector<8xf32> to vector<8x1xf32>
    %cst_2 = arith.constant 2.560000e+02 : f32
    %4 = vector.broadcast %cst_2 : f32 to vector<8x1xf32>
    %5 = arith.divf %3, %4 : vector<8x1xf32>
    %6 = vector.broadcast %5 : vector<8x1xf32> to vector<8x256xf32>
    %7 = arith.subf %1, %6 : vector<8x256xf32>
    %8 = arith.mulf %7, %7 : vector<8x256xf32>
    %cst_3 = arith.constant dense<0.000000e+00> : vector<8xf32>
    %9 = vector.multi_reduction <add>, %8, %cst_3 [1] : vector<8x256xf32> to vector<8xf32>
    %10 = vector.shape_cast %9 : vector<8xf32> to vector<8x1xf32>
    %cst_4 = arith.constant 0.00392156886 : f32
    %11 = vector.broadcast %cst_4 : f32 to vector<8x1xf32>
    %12 = arith.mulf %10, %11 : vector<8x1xf32>
    %13 = math.sqrt %12 : vector<8x1xf32>
    %cst_5 = arith.constant 9.99999997E-7 : f32
    %14 = vector.broadcast %cst_5 : f32 to vector<8x1xf32>
    %15 = arith.addf %13, %14 : vector<8x1xf32>
    %16 = tpu.reciprocal %15 : vector<8x1xf32> -> vector<8x1xf32>
    %c0_6 = arith.constant 0 : index
    %c0_7 = arith.constant 0 : index
    %17 = vector.load %arg2[%c0_6, %c0_7] : memref<1x256xf32, #tpu.memory_space<vmem>>, vector<1x256xf32>
    %18 = vector.broadcast %16 : vector<8x1xf32> to vector<8x256xf32>
    %19 = arith.mulf %7, %18 : vector<8x256xf32>
    %20 = vector.broadcast %17 : vector<1x256xf32> to vector<8x256xf32>
    %21 = arith.mulf %20, %19 : vector<8x256xf32>
    %c0_8 = arith.constant 0 : index
    %c0_9 = arith.constant 0 : index
    %22 = vector.load %arg3[%c0_8, %c0_9] : memref<1x256xf32, #tpu.memory_space<vmem>>, vector<1x256xf32>
    %23 = vector.broadcast %22 : vector<1x256xf32> to vector<8x256xf32>
    %24 = arith.addf %21, %23 : vector<8x256xf32>
    %25 = vector.extract_strided_slice %24 {offsets = [0, 0], sizes = [8, 128], strides = [1, 1]} : vector<8x256xf32> to vector<8x128xf32>
    %26 = vector.extract_strided_slice %24 {offsets = [0, 128], sizes = [8, 128], strides = [1, 1]} : vector<8x256xf32> to vector<8x128xf32>
    %cst_10 = arith.constant 5.000000e-01 : f32
    %27 = vector.broadcast %cst_10 : f32 to vector<8x128xf32>
    %28 = arith.mulf %27, %26 : vector<8x128xf32>
    %29 = math.tanh %28 : vector<8x128xf32>
    %cst_11 = arith.constant 1.000000e+00 : f32
    %30 = vector.broadcast %cst_11 : f32 to vector<8x128xf32>
    %31 = arith.addf %29, %30 : vector<8x128xf32>
    %cst_12 = arith.constant 5.000000e-01 : f32
    %32 = vector.broadcast %cst_12 : f32 to vector<8x128xf32>
    %33 = arith.mulf %32, %31 : vector<8x128xf32>
    %34 = arith.mulf %25, %33 : vector<8x128xf32>
    %c0_13 = arith.constant 0 : index
    %c0_14 = arith.constant 0 : index
    %35 = vector.load %arg4[%c0_13, %c0_14] : memref<128x256xf32, #tpu.memory_space<vmem>>, vector<128x256xf32>
    %cst_15 = arith.constant dense<0.000000e+00> : vector<8x256xf32>
    %36 = tpu.matmul %34, %35, %cst_15 {dimension_numbers = #tpu.dot_dimension_numbers<[1], [0], [0], [1], [0, 0, 1, 1], [], []>} : vector<8x128xf32>, vector<128x256xf32>, vector<8x256xf32> -> vector<8x256xf32>
    %c0_16 = arith.constant 0 : index
    %c0_17 = arith.constant 0 : index
    %37 = vector.load %arg5[%c0_16, %c0_17] : memref<1x256xf32, #tpu.memory_space<vmem>>, vector<1x256xf32>
    %38 = vector.broadcast %37 : vector<1x256xf32> to vector<8x256xf32>
    %39 = arith.addf %36, %38 : vector<8x256xf32>
    %c0_18 = arith.constant 0 : index
    %c0_19 = arith.constant 0 : index
    %40 = vector.load %arg8[%c0_18, %c0_19] : memref<1x1024xf32, #tpu.memory_space<vmem>>, vector<1x1024xf32>
    %c0_20 = arith.constant 0 : index
    %c0_21 = arith.constant 0 : index
    %41 = vector.load %arg6[%c0_20, %c0_21] : memref<256x1024xf32, #tpu.memory_space<vmem>>, vector<256x1024xf32>
    %cst_22 = arith.constant dense<0.000000e+00> : vector<8x1024xf32>
    %42 = tpu.matmul %39, %41, %cst_22 {dimension_numbers = #tpu.dot_dimension_numbers<[1], [0], [0], [1], [0, 0, 1, 1], [], []>} : vector<8x256xf32>, vector<256x1024xf32>, vector<8x1024xf32> -> vector<8x1024xf32>
    %43 = vector.broadcast %40 : vector<1x1024xf32> to vector<8x1024xf32>
    %44 = arith.addf %42, %43 : vector<8x1024xf32>
    %45 = vector.shape_cast %40 : vector<1x1024xf32> to vector<1x1024xf32>
    %46 = vector.broadcast %45 : vector<1x1024xf32> to vector<8x1024xf32>
    %c0_23 = arith.constant 0 : index
    %c0_24 = arith.constant 0 : index
    %47 = vector.load %arg10[%c0_23, %c0_24] : memref<16x1024xf32, #tpu.memory_space<vmem>>, vector<8x1024xf32>
    tpu.vector_store %arg10[%c0_23, %c0_24], %46 {strides = array<i32>} : memref<16x1024xf32, #tpu.memory_space<vmem>>, vector<8x1024xf32>,
    %c8 = arith.constant 8 : index
    %c0_25 = arith.constant 0 : index
    %48 = vector.load %arg10[%c8, %c0_25] : memref<16x1024xf32, #tpu.memory_space<vmem>>, vector<8x1024xf32>
    tpu.vector_store %arg10[%c8, %c0_25], %44 {strides = array<i32>} : memref<16x1024xf32, #tpu.memory_space<vmem>>, vector<8x1024xf32>,
    %c0_26 = arith.constant 0 : index
    %c0_27 = arith.constant 0 : index
    %49 = vector.load %arg7[%c0_26, %c0_27] : memref<256x1024xf32, #tpu.memory_space<vmem>>, vector<256x1024xf32>
    %cst_28 = arith.constant 0.000000e+00 : f32
    %50 = vector.broadcast %cst_28 : f32 to vector<8x256xf32>
    %c6 = arith.constant 6 : index
    %c0_29 = arith.constant 0 : index
    %51 = vector.load %arg10[%c6, %c0_29] : memref<16x1024xf32, #tpu.memory_space<vmem>>, vector<8x1024xf32>
    %52 = vector.extract_strided_slice %51 {offsets = [0, 0], sizes = [8, 256], strides = [1, 1]} : vector<8x1024xf32> to vector<8x256xf32>
    %cst_30 = arith.constant 5.000000e-01 : f32
    %53 = vector.broadcast %cst_30 : f32 to vector<8x256xf32>
    %54 = arith.mulf %53, %52 : vector<8x256xf32>
    %55 = math.tanh %54 : vector<8x256xf32>
    %cst_31 = arith.constant 1.000000e+00 : f32
    %56 = vector.broadcast %cst_31 : f32 to vector<8x256xf32>
    %57 = arith.addf %55, %56 : vector<8x256xf32>
    %cst_32 = arith.constant 5.000000e-01 : f32
    %58 = vector.broadcast %cst_32 : f32 to vector<8x256xf32>
    %59 = arith.mulf %58, %57 : vector<8x256xf32>
    %60 = vector.extract_strided_slice %51 {offsets = [0, 256], sizes = [8, 256], strides = [1, 1]} : vector<8x1024xf32> to vector<8x256xf32>
    %cst_33 = arith.constant 5.000000e-01 : f32
    %61 = vector.broadcast %cst_33 : f32 to vector<8x256xf32>
    %62 = arith.mulf %61, %60 : vector<8x256xf32>
    %63 = math.tanh %62 : vector<8x256xf32>
    %cst_34 = arith.constant 1.000000e+00 : f32
    %64 = vector.broadcast %cst_34 : f32 to vector<8x256xf32>
    %65 = arith.addf %63, %64 : vector<8x256xf32>
    %cst_35 = arith.constant 5.000000e-01 : f32
    %66 = vector.broadcast %cst_35 : f32 to vector<8x256xf32>
    %67 = arith.mulf %66, %65 : vector<8x256xf32>
    %68 = vector.extract_strided_slice %51 {offsets = [0, 512], sizes = [8, 256], strides = [1, 1]} : vector<8x1024xf32> to vector<8x256xf32>
    %69 = math.tanh %68 : vector<8x256xf32>
    %70 = vector.extract_strided_slice %51 {offsets = [0, 768], sizes = [8, 256], strides = [1, 1]} : vector<8x1024xf32> to vector<8x256xf32>
    %cst_36 = arith.constant 5.000000e-01 : f32
    %71 = vector.broadcast %cst_36 : f32 to vector<8x256xf32>
    %72 = arith.mulf %71, %70 : vector<8x256xf32>
    %73 = math.tanh %72 : vector<8x256xf32>
    %cst_37 = arith.constant 1.000000e+00 : f32
    %74 = vector.broadcast %cst_37 : f32 to vector<8x256xf32>
    %75 = arith.addf %73, %74 : vector<8x256xf32>
    %cst_38 = arith.constant 5.000000e-01 : f32
    %76 = vector.broadcast %cst_38 : f32 to vector<8x256xf32>
    %77 = arith.mulf %76, %75 : vector<8x256xf32>
    %78 = arith.mulf %67, %50 : vector<8x256xf32>
    %79 = arith.mulf %59, %69 : vector<8x256xf32>
    %80 = arith.addf %78, %79 : vector<8x256xf32>
    %81 = math.tanh %80 : vector<8x256xf32>
    %82 = arith.mulf %77, %81 : vector<8x256xf32>
    %c7 = arith.constant 7 : index
    %c0_39 = arith.constant 0 : index
    %83 = vector.load %arg10[%c7, %c0_39] : memref<16x1024xf32, #tpu.memory_space<vmem>>, vector<8x1024xf32>
    %cst_40 = arith.constant dense<0.000000e+00> : vector<8x1024xf32>
    %84 = tpu.matmul %82, %49, %cst_40 {dimension_numbers = #tpu.dot_dimension_numbers<[1], [0], [0], [1], [0, 0, 1, 1], [], []>} : vector<8x256xf32>, vector<256x1024xf32>, vector<8x1024xf32> -> vector<8x1024xf32>
    %85 = arith.addf %83, %84 : vector<8x1024xf32>
    %86 = vector.extract_strided_slice %85 {offsets = [0, 0], sizes = [8, 256], strides = [1, 1]} : vector<8x1024xf32> to vector<8x256xf32>
    %cst_41 = arith.constant 5.000000e-01 : f32
    %87 = vector.broadcast %cst_41 : f32 to vector<8x256xf32>
    %88 = arith.mulf %87, %86 : vector<8x256xf32>
    %89 = math.tanh %88 : vector<8x256xf32>
    %cst_42 = arith.constant 1.000000e+00 : f32
    %90 = vector.broadcast %cst_42 : f32 to vector<8x256xf32>
    %91 = arith.addf %89, %90 : vector<8x256xf32>
    %cst_43 = arith.constant 5.000000e-01 : f32
    %92 = vector.broadcast %cst_43 : f32 to vector<8x256xf32>
    %93 = arith.mulf %92, %91 : vector<8x256xf32>
    %94 = vector.extract_strided_slice %85 {offsets = [0, 256], sizes = [8, 256], strides = [1, 1]} : vector<8x1024xf32> to vector<8x256xf32>
    %cst_44 = arith.constant 5.000000e-01 : f32
    %95 = vector.broadcast %cst_44 : f32 to vector<8x256xf32>
    %96 = arith.mulf %95, %94 : vector<8x256xf32>
    %97 = math.tanh %96 : vector<8x256xf32>
    %cst_45 = arith.constant 1.000000e+00 : f32
    %98 = vector.broadcast %cst_45 : f32 to vector<8x256xf32>
    %99 = arith.addf %97, %98 : vector<8x256xf32>
    %cst_46 = arith.constant 5.000000e-01 : f32
    %100 = vector.broadcast %cst_46 : f32 to vector<8x256xf32>
    %101 = arith.mulf %100, %99 : vector<8x256xf32>
    %102 = vector.extract_strided_slice %85 {offsets = [0, 512], sizes = [8, 256], strides = [1, 1]} : vector<8x1024xf32> to vector<8x256xf32>
    %103 = math.tanh %102 : vector<8x256xf32>
    %104 = vector.extract_strided_slice %85 {offsets = [0, 768], sizes = [8, 256], strides = [1, 1]} : vector<8x1024xf32> to vector<8x256xf32>
    %cst_47 = arith.constant 5.000000e-01 : f32
    %105 = vector.broadcast %cst_47 : f32 to vector<8x256xf32>
    %106 = arith.mulf %105, %104 : vector<8x256xf32>
    %107 = math.tanh %106 : vector<8x256xf32>
    %cst_48 = arith.constant 1.000000e+00 : f32
    %108 = vector.broadcast %cst_48 : f32 to vector<8x256xf32>
    %109 = arith.addf %107, %108 : vector<8x256xf32>
    %cst_49 = arith.constant 5.000000e-01 : f32
    %110 = vector.broadcast %cst_49 : f32 to vector<8x256xf32>
    %111 = arith.mulf %110, %109 : vector<8x256xf32>
    %112 = arith.mulf %101, %80 : vector<8x256xf32>
    %113 = arith.mulf %93, %103 : vector<8x256xf32>
    %114 = arith.addf %112, %113 : vector<8x256xf32>
    %115 = math.tanh %114 : vector<8x256xf32>
    %116 = arith.mulf %111, %115 : vector<8x256xf32>
    %c8_50 = arith.constant 8 : index
    %c0_51 = arith.constant 0 : index
    %117 = vector.load %arg10[%c8_50, %c0_51] : memref<16x1024xf32, #tpu.memory_space<vmem>>, vector<8x1024xf32>
    %cst_52 = arith.constant dense<0.000000e+00> : vector<8x1024xf32>
    %118 = tpu.matmul %116, %49, %cst_52 {dimension_numbers = #tpu.dot_dimension_numbers<[1], [0], [0], [1], [0, 0, 1, 1], [], []>} : vector<8x256xf32>, vector<256x1024xf32>, vector<8x1024xf32> -> vector<8x1024xf32>
    %119 = arith.addf %117, %118 : vector<8x1024xf32>
    %120 = vector.extract_strided_slice %119 {offsets = [0, 0], sizes = [8, 256], strides = [1, 1]} : vector<8x1024xf32> to vector<8x256xf32>
    %cst_53 = arith.constant 5.000000e-01 : f32
    %121 = vector.broadcast %cst_53 : f32 to vector<8x256xf32>
    %122 = arith.mulf %121, %120 : vector<8x256xf32>
    %123 = math.tanh %122 : vector<8x256xf32>
    %cst_54 = arith.constant 1.000000e+00 : f32
    %124 = vector.broadcast %cst_54 : f32 to vector<8x256xf32>
    %125 = arith.addf %123, %124 : vector<8x256xf32>
    %cst_55 = arith.constant 5.000000e-01 : f32
    %126 = vector.broadcast %cst_55 : f32 to vector<8x256xf32>
    %127 = arith.mulf %126, %125 : vector<8x256xf32>
    %128 = vector.extract_strided_slice %119 {offsets = [0, 256], sizes = [8, 256], strides = [1, 1]} : vector<8x1024xf32> to vector<8x256xf32>
    %cst_56 = arith.constant 5.000000e-01 : f32
    %129 = vector.broadcast %cst_56 : f32 to vector<8x256xf32>
    %130 = arith.mulf %129, %128 : vector<8x256xf32>
    %131 = math.tanh %130 : vector<8x256xf32>
    %cst_57 = arith.constant 1.000000e+00 : f32
    %132 = vector.broadcast %cst_57 : f32 to vector<8x256xf32>
    %133 = arith.addf %131, %132 : vector<8x256xf32>
    %cst_58 = arith.constant 5.000000e-01 : f32
    %134 = vector.broadcast %cst_58 : f32 to vector<8x256xf32>
    %135 = arith.mulf %134, %133 : vector<8x256xf32>
    %136 = vector.extract_strided_slice %119 {offsets = [0, 512], sizes = [8, 256], strides = [1, 1]} : vector<8x1024xf32> to vector<8x256xf32>
    %137 = math.tanh %136 : vector<8x256xf32>
    %138 = vector.extract_strided_slice %119 {offsets = [0, 768], sizes = [8, 256], strides = [1, 1]} : vector<8x1024xf32> to vector<8x256xf32>
    %cst_59 = arith.constant 5.000000e-01 : f32
    %139 = vector.broadcast %cst_59 : f32 to vector<8x256xf32>
    %140 = arith.mulf %139, %138 : vector<8x256xf32>
    %141 = math.tanh %140 : vector<8x256xf32>
    %cst_60 = arith.constant 1.000000e+00 : f32
    %142 = vector.broadcast %cst_60 : f32 to vector<8x256xf32>
    %143 = arith.addf %141, %142 : vector<8x256xf32>
    %cst_61 = arith.constant 5.000000e-01 : f32
    %144 = vector.broadcast %cst_61 : f32 to vector<8x256xf32>
    %145 = arith.mulf %144, %143 : vector<8x256xf32>
    %146 = arith.mulf %135, %114 : vector<8x256xf32>
    %147 = arith.mulf %127, %137 : vector<8x256xf32>
    %148 = arith.addf %146, %147 : vector<8x256xf32>
    %149 = math.tanh %148 : vector<8x256xf32>
    %150 = arith.mulf %145, %149 : vector<8x256xf32>
    %151 = arith.addf %1, %150 : vector<8x256xf32>
    %c0_62 = arith.constant 0 : index
    %c0_63 = arith.constant 0 : index
    %c0_64 = arith.constant 0 : index
    %152 = vector.load %arg9[%c0_62, %c0_63, %c0_64] : memref<1x8x256xf32, #tpu.memory_space<vmem>>, vector<1x8x256xf32>
    %153 = vector.shape_cast %152 : vector<1x8x256xf32> to vector<8x256xf32>
    %154 = vector.shape_cast %151 : vector<8x256xf32> to vector<1x8x256xf32>
    tpu.vector_store %arg9[%c0_62, %c0_63, %c0_64], %154 {strides = array<i32>} : memref<1x8x256xf32, #tpu.memory_space<vmem>>, vector<1x8x256xf32>,
    return
  }
  func.func @transform_0(%arg0: i32) -> (i32, i32, i32) {
    %c0_i32 = arith.constant 0 : i32
    %c0_i32_0 = arith.constant 0 : i32
    %c0_i32_1 = arith.constant 0 : i32
    return %arg0, %c0_i32, %c0_i32_0 : i32, i32, i32
  }
  func.func @transform_1(%arg0: i32) -> (i32, i32) {
    %c0_i32 = arith.constant 0 : i32
    %c0_i32_0 = arith.constant 0 : i32
    %c0_i32_1 = arith.constant 0 : i32
    return %c0_i32, %c0_i32_0 : i32, i32
  }
  func.func @transform_2(%arg0: i32) -> (i32, i32) {
    %c0_i32 = arith.constant 0 : i32
    %c0_i32_0 = arith.constant 0 : i32
    %c0_i32_1 = arith.constant 0 : i32
    return %c0_i32, %c0_i32_0 : i32, i32
  }
  func.func @transform_3(%arg0: i32) -> (i32, i32) {
    %c0_i32 = arith.constant 0 : i32
    %c0_i32_0 = arith.constant 0 : i32
    %c0_i32_1 = arith.constant 0 : i32
    return %c0_i32, %c0_i32_0 : i32, i32
  }
  func.func @transform_4(%arg0: i32) -> (i32, i32) {
    %c0_i32 = arith.constant 0 : i32
    %c0_i32_0 = arith.constant 0 : i32
    %c0_i32_1 = arith.constant 0 : i32
    return %c0_i32, %c0_i32_0 : i32, i32
  }
  func.func @transform_5(%arg0: i32) -> (i32, i32) {
    %c0_i32 = arith.constant 0 : i32
    %c0_i32_0 = arith.constant 0 : i32
    %c0_i32_1 = arith.constant 0 : i32
    return %c0_i32, %c0_i32_0 : i32, i32
  }
  func.func @transform_6(%arg0: i32) -> (i32, i32) {
    %c0_i32 = arith.constant 0 : i32
    %c0_i32_0 = arith.constant 0 : i32
    %c0_i32_1 = arith.constant 0 : i32
    return %c0_i32, %c0_i32_0 : i32, i32
  }
  func.func @transform_7(%arg0: i32) -> (i32, i32) {
    %c0_i32 = arith.constant 0 : i32
    %c0_i32_0 = arith.constant 0 : i32
    %c0_i32_1 = arith.constant 0 : i32
    return %c0_i32, %c0_i32_0 : i32, i32
  }
  func.func @transform_8(%arg0: i32) -> (i32, i32, i32) {
    %c0_i32 = arith.constant 0 : i32
    %c0_i32_0 = arith.constant 0 : i32
    %c0_i32_1 = arith.constant 0 : i32
    return %arg0, %c0_i32, %c0_i32_0 : i32, i32, i32
  }
}

</mosaic_0001>

<llo_original>
// kernel: tpu_custom_call.1
$region0: #{tpu_custom_call.1}
  #allocation0 [shape = 'u32[]', space=smem, size = 0x4, offset = 0x4, fixed_abs, tag = 'smem constant byte address 0x4 - core index']
  #allocation1 [shape = 'u32[144,128]{1,0:T(1,128)}', space=vmem, size = 0x12000, scoped, tag = 'internal scratch']
  #allocation2 [shape = 'f32[16,1024]{1,0:T(8,128)}', space=vmem, size = 0x10000, scoped, tag = 'scratch operand']
  %s0 = inlined_call_operand.hbm [shape: f32[2,8,256], index: 0, kind: input, shape index: {}]
  %s1 = inlined_call_operand.vmem [shape: f32[1,256], index: 1, kind: input, shape index: {}]
  %s2 = inlined_call_operand.vmem [shape: f32[1,256], index: 2, kind: input, shape index: {}]
  %s3 = inlined_call_operand.hbm [shape: f32[128,256], index: 3, kind: input, shape index: {}]
  %s4 = inlined_call_operand.vmem [shape: f32[1,256], index: 4, kind: input, shape index: {}]
  %s5 = inlined_call_operand.hbm [shape: f32[256,1024], index: 5, kind: input, shape index: {}]
  %s6 = inlined_call_operand.hbm [shape: f32[256,1024], index: 6, kind: input, shape index: {}]
  %s7 = inlined_call_operand.vmem [shape: f32[1,1024], index: 7, kind: input, shape index: {}]
  %s8 = inlined_call_operand.hbm [shape: f32[2,8,256], index: 8, kind: output, shape index: {}]
  %s9 = sld [smem:[#allocation0]]
  $region81: #{tpu_custom_call.1} parent=0
    _
  %s11 = ssub.s32 1, %s9
  %s12 = scalar_select 0, %s11, %s9
  $region1: #{tpu_custom_call.1} parent=0
    #allocation3 [shape = 'u8[16384]{0}', space=vmem, size = 0x4000, scoped, tag = 'input window, operand 0']
    #allocation4 [shape = 's32[2]{0}', space=sflag, size = 0x8, scoped, tag = 'scoped memory for tpu_custom_call.1']
    #allocation5 [shape = 's32[2]{0}', space=sflag, size = 0x8, scoped, tag = 'scoped memory for tpu_custom_call.1']
    #allocation6 [shape = 'u8[131072]{0}', space=vmem, size = 0x20000, scoped, tag = 'input window, operand 3, single buffered']
    #allocation7 [shape = 's32[1]{0}', space=sflag, size = 0x4, scoped, tag = 'scoped memory for tpu_custom_call.1']
    #allocation8 [shape = 'u8[1048576]{0}', space=vmem, size = 0x100000, scoped, tag = 'input window, operand 5, single buffered']
    #allocation9 [shape = 'u8[1048576]{0}', space=vmem, size = 0x100000, scoped, tag = 'input window, operand 6, single buffered']
    #allocation10 [shape = 's32[1]{0}', space=sflag, size = 0x4, scoped, tag = 'scoped memory for tpu_custom_call.1']
    #allocation11 [shape = 'u8[16384]{0}', space=vmem, size = 0x4000, scoped, tag = 'output window, operand 0']
    %13 = vsyncpa [#allocation4], 0
    %s14 = scalar_lea.sflag [#allocation4], 1
    %15 = vsyncpa %s14, 0
    %16 = vsyncpa [#allocation7], 0
    %17 = vsyncpa [#allocation10], 0
    %18 = vsyncpa [#allocation5], 0
    %s19 = scalar_lea.sflag [#allocation5], 1
    %20 = vsyncpa %s19, 0
    loop: start=0, step=1, limit=4
    $region2: #{tpu_custom_call.1} parent=1 // loop_pre_header
      _
    $region3: #{tpu_custom_call.1} parent=1 // loop_header
      %s22 = sphi 0, %s26
      %p23 = scmp.ge.s32.totalorder %s22, 4
      %s32 = sphi 0, %s34
      %s35 = sphi 0, %s32
      %s36 = sphi 0, %s35
      %s52 = sphi 0, %s36
      %s56 = sphi 0, %s56
      %s58 = sphi 0, %s56
      %s59 = sphi 0, %s58
      %s73 = sphi 0, %s59
      %s77 = sphi 0, %s77
      %s79 = sphi 0, %s77
      %s80 = sphi 0, %s79
      %s94 = sphi 0, %s80
      %s98 = sphi 0, %s98
      %s100 = sphi 0, %s98
      %s101 = sphi 0, %s100
      %s115 = sphi 0, %s101
      %s119 = sphi 0, %s119
      %s121 = sphi 0, %s119
      %s122 = sphi 0, %s121
      %s136 = sphi 0, %s122
      %s140 = sphi 0, %s140
      %s142 = sphi 0, %s140
      %s143 = sphi 0, %s142
      %s157 = sphi 0, %s143
      %s161 = sphi 0, %s161
      %s163 = sphi 0, %s161
      %s164 = sphi 0, %s163
      %s178 = sphi 0, %s164
      %s182 = sphi 0, %s182
      %s184 = sphi 0, %s182
      %s185 = sphi 0, %s184
      %s199 = sphi 0, %s185
      %s205 = sphi 0, %s207
      %s208 = sphi 0, %s205
      %s209 = sphi 0, %s208
      %s225 = sphi 0, %s209
    $region4: #{tpu_custom_call.1} parent=1 // loop_header_branch
      %25 = sbr.rel (%p23) target = $region8
    $region5: #{tpu_custom_call.1} parent=1 // loop_body
      %s27 = ssub.s32 %s22, 1
      %s28 = ssub.s32 %s22, 2
      %s29 = sadd.s32 %s22, 1
      %s30 = ssub.s32 %s22, %s29
      %p31 = scmp.eq.s32.totalorder %s30, 0
      %s33 = sadd.s32 %s32, 1
      %s34 = scalar_select %p31, %s32, %s33
      %p37 = pneg %p31
      %p38 = scmp.eq.s32.totalorder %s22, 1
      %p39 = por %p37, %p38
      %p40 = scmp.ne.s32.totalorder %s32, %s35
      %p41 = scmp.eq.s32.totalorder %s22, 0
      %p42 = por %p40, %p41
      %p43 = scmp.ne.s32.totalorder %s32, %s35
      %p44 = scmp.eq.s32.totalorder %s27, 1
      %p45 = por %p43, %p44
      %p46 = scmp.ne.s32.totalorder %s35, %s36
      %p47 = scmp.eq.s32.totalorder %s27, 0
      %p48 = por %p46, %p47
      %p49 = scmp.ne.s32.totalorder %s35, %s36
      %p50 = scmp.eq.s32.totalorder %s28, 1
      %p51 = por %p49, %p50
      %p53 = scmp.ne.s32.totalorder %s36, %s52
      %p54 = scmp.eq.s32.totalorder %s28, 0
      %p55 = por %p53, %p54
      %s57 = sadd.s32 %s56, 1
      %p60 = scmp.eq.s32.totalorder %s22, 1
      %p61 = scmp.ne.s32.totalorder %s56, %s58
      %p62 = scmp.eq.s32.totalorder %s22, 0
      %p63 = por %p61, %p62
      %p64 = scmp.ne.s32.totalorder %s56, %s58
      %p65 = scmp.eq.s32.totalorder %s27, 1
      %p66 = por %p64, %p65
      %p67 = scmp.ne.s32.totalorder %s58, %s59
      %p68 = scmp.eq.s32.totalorder %s27, 0
      %p69 = por %p67, %p68
      %p70 = scmp.ne.s32.totalorder %s58, %s59
      %p71 = scmp.eq.s32.totalorder %s28, 1
      %p72 = por %p70, %p71
      %p74 = scmp.ne.s32.totalorder %s59, %s73
      %p75 = scmp.eq.s32.totalorder %s28, 0
      %p76 = por %p74, %p75
      %s78 = sadd.s32 %s77, 1
      %p81 = scmp.eq.s32.totalorder %s22, 1
      %p82 = scmp.ne.s32.totalorder %s77, %s79
      %p83 = scmp.eq.s32.totalorder %s22, 0
      %p84 = por %p82, %p83
      %p85 = scmp.ne.s32.totalorder %s77, %s79
      %p86 = scmp.eq.s32.totalorder %s27, 1
      %p87 = por %p85, %p86
      %p88 = scmp.ne.s32.totalorder %s79, %s80
      %p89 = scmp.eq.s32.totalorder %s27, 0
      %p90 = por %p88, %p89
      %p91 = scmp.ne.s32.totalorder %s79, %s80
      %p92 = scmp.eq.s32.totalorder %s28, 1
      %p93 = por %p91, %p92
      %p95 = scmp.ne.s32.totalorder %s80, %s94
      %p96 = scmp.eq.s32.totalorder %s28, 0
      %p97 = por %p95, %p96
      %s99 = sadd.s32 %s98, 1
      %p102 = scmp.eq.s32.totalorder %s22, 1
      %p103 = scmp.ne.s32.totalorder %s98, %s100
      %p104 = scmp.eq.s32.totalorder %s22, 0
      %p105 = por %p103, %p104
      %p106 = scmp.ne.s32.totalorder %s98, %s100
      %p107 = scmp.eq.s32.totalorder %s27, 1
      %p108 = por %p106, %p107
      %p109 = scmp.ne.s32.totalorder %s100, %s101
      %p110 = scmp.eq.s32.totalorder %s27, 0
      %p111 = por %p109, %p110
      %p112 = scmp.ne.s32.totalorder %s100, %s101
      %p113 = scmp.eq.s32.totalorder %s28, 1
      %p114 = por %p112, %p113
      %p116 = scmp.ne.s32.totalorder %s101, %s115
      %p117 = scmp.eq.s32.totalorder %s28, 0
      %p118 = por %p116, %p117
      %s120 = sadd.s32 %s119, 1
      %p123 = scmp.eq.s32.totalorder %s22, 1
      %p124 = scmp.ne.s32.totalorder %s119, %s121
      %p125 = scmp.eq.s32.totalorder %s22, 0
      %p126 = por %p124, %p125
      %p127 = scmp.ne.s32.totalorder %s119, %s121
      %p128 = scmp.eq.s32.totalorder %s27, 1
      %p129 = por %p127, %p128
      %p130 = scmp.ne.s32.totalorder %s121, %s122
      %p131 = scmp.eq.s32.totalorder %s27, 0
      %p132 = por %p130, %p131
      %p133 = scmp.ne.s32.totalorder %s121, %s122
      %p134 = scmp.eq.s32.totalorder %s28, 1
      %p135 = por %p133, %p134
      %p137 = scmp.ne.s32.totalorder %s122, %s136
      %p138 = scmp.eq.s32.totalorder %s28, 0
      %p139 = por %p137, %p138
      %s141 = sadd.s32 %s140, 1
      %p144 = scmp.eq.s32.totalorder %s22, 1
      %p145 = scmp.ne.s32.totalorder %s140, %s142
      %p146 = scmp.eq.s32.totalorder %s22, 0
      %p147 = por %p145, %p146
      %p148 = scmp.ne.s32.totalorder %s140, %s142
      %p149 = scmp.eq.s32.totalorder %s27, 1
      %p150 = por %p148, %p149
      %p151 = scmp.ne.s32.totalorder %s142, %s143
      %p152 = scmp.eq.s32.totalorder %s27, 0
      %p153 = por %p151, %p152
      %p154 = scmp.ne.s32.totalorder %s142, %s143
      %p155 = scmp.eq.s32.totalorder %s28, 1
      %p156 = por %p154, %p155
      %p158 = scmp.ne.s32.totalorder %s143, %s157
      %p159 = scmp.eq.s32.totalorder %s28, 0
      %p160 = por %p158, %p159
      %s162 = sadd.s32 %s161, 1
      %p165 = scmp.eq.s32.totalorder %s22, 1
      %p166 = scmp.ne.s32.totalorder %s161, %s163
      %p167 = scmp.eq.s32.totalorder %s22, 0
      %p168 = por %p166, %p167
      %p169 = scmp.ne.s32.totalorder %s161, %s163
      %p170 = scmp.eq.s32.totalorder %s27, 1
      %p171 = por %p169, %p170
      %p172 = scmp.ne.s32.totalorder %s163, %s164
      %p173 = scmp.eq.s32.totalorder %s27, 0
      %p174 = por %p172, %p173
      %p175 = scmp.ne.s32.totalorder %s163, %s164
      %p176 = scmp.eq.s32.totalorder %s28, 1
      %p177 = por %p175, %p176
      %p179 = scmp.ne.s32.totalorder %s164, %s178
      %p180 = scmp.eq.s32.totalorder %s28, 0
      %p181 = por %p179, %p180
      %s183 = sadd.s32 %s182, 1
      %p186 = scmp.eq.s32.totalorder %s22, 1
      %p187 = scmp.ne.s32.totalorder %s182, %s184
      %p188 = scmp.eq.s32.totalorder %s22, 0
      %p189 = por %p187, %p188
      %p190 = scmp.ne.s32.totalorder %s182, %s184
      %p191 = scmp.eq.s32.totalorder %s27, 1
      %p192 = por %p190, %p191
      %p193 = scmp.ne.s32.totalorder %s184, %s185
      %p194 = scmp.eq.s32.totalorder %s27, 0
      %p195 = por %p193, %p194
      %p196 = scmp.ne.s32.totalorder %s184, %s185
      %p197 = scmp.eq.s32.totalorder %s28, 1
      %p198 = por %p196, %p197
      %p200 = scmp.ne.s32.totalorder %s185, %s199
      %p201 = scmp.eq.s32.totalorder %s28, 0
      %p202 = por %p200, %p201
      %s203 = ssub.s32 %s22, %s29
      %p204 = scmp.eq.s32.totalorder %s203, 0
      %s206 = sadd.s32 %s205, 1
      %s207 = scalar_select %p204, %s205, %s206
      %p210 = pneg %p204
      %p211 = scmp.eq.s32.totalorder %s22, 1
      %p212 = por %p210, %p211
      %p213 = scmp.ne.s32.totalorder %s205, %s208
      %p214 = scmp.eq.s32.totalorder %s22, 0
      %p215 = por %p213, %p214
      %p216 = scmp.ne.s32.totalorder %s205, %s208
      %p217 = scmp.eq.s32.totalorder %s27, 1
      %p218 = por %p216, %p217
      %p219 = scmp.ne.s32.totalorder %s208, %s209
      %p220 = scmp.eq.s32.totalorder %s27, 0
      %p221 = por %p219, %p220
      %p222 = scmp.ne.s32.totalorder %s208, %s209
      %p223 = scmp.eq.s32.totalorder %s28, 1
      %p224 = por %p222, %p223
      %p226 = scmp.ne.s32.totalorder %s209, %s225
      %p227 = scmp.eq.s32.totalorder %s28, 0
      %p228 = por %p226, %p227
      %p229 = scmp.le.s32.totalorder 1, %s22
      %p230 = scmp.lt.s32.totalorder %s22, 3
      %p231 = pnand %p229, %p230
      %p232 = pneg %p231
      // Predicated region
      $region9: #{tpu_custom_call.1} parent=5 // pred_check
        _
      $region10: #{tpu_custom_call.1} parent=5 // pred_check_branch
        %234 = sbr.rel (%p231) target = $region12
      $region11: #{tpu_custom_call.1} parent=5 // pred_region
        %s235 = ssub.s32 %s22, 1
        // Predicated region
        $region13: #{tpu_custom_call.1} parent=11 // pred_check
          %p236 = pneg %p69
        $region14: #{tpu_custom_call.1} parent=11 // pred_check_branch
          %238 = sbr.rel (%p236) target = $region16
        $region15: #{tpu_custom_call.1} parent=11 // pred_region
          _
        $region16: #{tpu_custom_call.1} parent=11 // pred_fallthru
          _
        // Predicated region
        $region17: #{tpu_custom_call.1} parent=11 // pred_check
          %p239 = pneg %p90
        $region18: #{tpu_custom_call.1} parent=11 // pred_check_branch
          %241 = sbr.rel (%p239) target = $region20
        $region19: #{tpu_custom_call.1} parent=11 // pred_region
          _
        $region20: #{tpu_custom_call.1} parent=11 // pred_fallthru
          _
        // Predicated region
        $region21: #{tpu_custom_call.1} parent=11 // pred_check
          %p242 = pneg %p111
        $region22: #{tpu_custom_call.1} parent=11 // pred_check_branch
          %244 = sbr.rel (%p242) target = $region24
        $region23: #{tpu_custom_call.1} parent=11 // pred_region
          %s246 = ssub.s32 4096, 4096
          %247 = vsyncadd [#allocation7], %s246
          %s248 = sshll.u32 [#allocation6], 4
          %s249 = int_to_ptr.vmem [resolvable:$true] %s248
          %254 = dma.hbm_to_vmem [thread:$0]  %s3, 4096, %s249, [#allocation7], 256, 256, 16
        $region24: #{tpu_custom_call.1} parent=11 // pred_fallthru
          _
        // Predicated region
        $region25: #{tpu_custom_call.1} parent=11 // pred_check
          %p255 = pneg %p132
        $region26: #{tpu_custom_call.1} parent=11 // pred_check_branch
          %257 = sbr.rel (%p255) target = $region28
        $region27: #{tpu_custom_call.1} parent=11 // pred_region
          _
        $region28: #{tpu_custom_call.1} parent=11 // pred_fallthru
          _
        // Predicated region
        $region29: #{tpu_custom_call.1} parent=11 // pred_check
          %p258 = pneg %p153
        $region30: #{tpu_custom_call.1} parent=11 // pred_check_branch
          %260 = sbr.rel (%p258) target = $region32
        $region31: #{tpu_custom_call.1} parent=11 // pred_region
          %s262 = ssub.s32 32768, 32768
          %263 = vsyncadd [#allocation7], %s262
          %s264 = sshll.u32 [#allocation8], 4
          %s265 = int_to_ptr.vmem [resolvable:$true] %s264
          %270 = dma.hbm_to_vmem [thread:$0]  %s5, 32768, %s265, [#allocation7], 1024, 1024, 64
        $region32: #{tpu_custom_call.1} parent=11 // pred_fallthru
          _
        // Predicated region
        $region33: #{tpu_custom_call.1} parent=11 // pred_check
          %p271 = pneg %p174
        $region34: #{tpu_custom_call.1} parent=11 // pred_check_branch
          %273 = sbr.rel (%p271) target = $region36
        $region35: #{tpu_custom_call.1} parent=11 // pred_region
          %s275 = ssub.s32 32768, 32768
          %276 = vsyncadd [#allocation10], %s275
          %s277 = sshll.u32 [#allocation9], 4
          %s278 = int_to_ptr.vmem [resolvable:$true] %s277
          %283 = dma.hbm_to_vmem [thread:$0]  %s6, 32768, %s278, [#allocation10], 1024, 1024, 64
        $region36: #{tpu_custom_call.1} parent=11 // pred_fallthru
          _
        // Predicated region
        $region37: #{tpu_custom_call.1} parent=11 // pred_check
          %p284 = pneg %p195
        $region38: #{tpu_custom_call.1} parent=11 // pred_check_branch
          %286 = sbr.rel (%p284) target = $region40
        $region39: #{tpu_custom_call.1} parent=11 // pred_region
          _
        $region40: #{tpu_custom_call.1} parent=11 // pred_fallthru
          _
      $region12: #{tpu_custom_call.1} parent=5 // pred_fallthru
        _
      %p287 = scmp.lt.s32.totalorder %s22, 2
      // Predicated region
      $region41: #{tpu_custom_call.1} parent=5 // pred_check
        %p288 = pneg %p287
      $region42: #{tpu_custom_call.1} parent=5 // pred_check_branch
        %290 = sbr.rel (%p288) target = $region44
      $region43: #{tpu_custom_call.1} parent=5 // pred_region
        // Predicated region
        $region45: #{tpu_custom_call.1} parent=43 // pred_check
          %p291 = pneg %p42
        $region46: #{tpu_custom_call.1} parent=43 // pred_check_branch
          %293 = sbr.rel (%p291) target = $region48
        $region47: #{tpu_custom_call.1} parent=43 // pred_region
          %s294 = sand.u32 %s32, 1
          %s295 = scalar_lea.sflag [#allocation4], %s294
          %s296 = sand.u32 %s32, 1
          %s297 = smul.addr %s296, 16
          %s298 = scalar_lea.vmem [#allocation3], %s297
          %s300 = ssub.s32 256, 256
          %301 = vsyncadd %s295, %s300
          %s302 = smul.addr %s22, 2
          %s303 = smul.addr %s302, 128
          %s304 = scalar_lea.hbm %s0, %s303
          %s306 = sshll.u32 %s298, 4
          %s307 = int_to_ptr.vmem [resolvable:$true] %s306
          %309 = dma.hbm_to_vmem [thread:$0]  %s304, 256, %s307, %s295
        $region48: #{tpu_custom_call.1} parent=43 // pred_fallthru
          _
      $region44: #{tpu_custom_call.1} parent=5 // pred_fallthru
        _
      %p310 = scmp.le.s32.totalorder 1, %s22
      %p311 = scmp.lt.s32.totalorder %s22, 3
      %p312 = pnand %p310, %p311
      %p313 = pneg %p312
      // Predicated region
      $region49: #{tpu_custom_call.1} parent=5 // pred_check
        _
      $region50: #{tpu_custom_call.1} parent=5 // pred_check_branch
        %315 = sbr.rel (%p312) target = $region52
      $region51: #{tpu_custom_call.1} parent=5 // pred_region
        %s316 = ssub.s32 %s22, 1
        %s317 = sand.u32 %s35, 1
        %s318 = scalar_lea.sflag [#allocation4], %s317
        %s319 = sand.u32 %s35, 1
        %s320 = smul.addr %s319, 16
        %s321 = scalar_lea.vmem [#allocation3], %s320
        // Predicated region
        $region53: #{tpu_custom_call.1} parent=51 // pred_check
          %p322 = pneg %p48
        $region54: #{tpu_custom_call.1} parent=51 // pred_check_branch
          %324 = sbr.rel (%p322) target = $region56
        $region55: #{tpu_custom_call.1} parent=51 // pred_region
          %325 = dma.done %s318, 256
        $region56: #{tpu_custom_call.1} parent=51 // pred_fallthru
          _
        // Predicated region
        $region57: #{tpu_custom_call.1} parent=51 // pred_check
          %p326 = pneg %p111
        $region58: #{tpu_custom_call.1} parent=51 // pred_check_branch
          %328 = sbr.rel (%p326) target = $region60
        $region59: #{tpu_custom_call.1} parent=51 // pred_region
          %329 = dma.done [#allocation7], 4096
        $region60: #{tpu_custom_call.1} parent=51 // pred_fallthru
          _
        // Predicated region
        $region61: #{tpu_custom_call.1} parent=51 // pred_check
          %p330 = pneg %p153
        $region62: #{tpu_custom_call.1} parent=51 // pred_check_branch
          %332 = sbr.rel (%p330) target = $region64
        $region63: #{tpu_custom_call.1} parent=51 // pred_region
          %333 = dma.done [#allocation7], 32768
        $region64: #{tpu_custom_call.1} parent=51 // pred_fallthru
          _
        // Predicated region
        $region65: #{tpu_custom_call.1} parent=51 // pred_check
          %p334 = pneg %p174
        $region66: #{tpu_custom_call.1} parent=51 // pred_check_branch
          %336 = sbr.rel (%p334) target = $region68
        $region67: #{tpu_custom_call.1} parent=51 // pred_region
          %337 = dma.done [#allocation10], 32768
        $region68: #{tpu_custom_call.1} parent=51 // pred_fallthru
          _
        %s338 = sand.u32 %s35, 1
        %s339 = scalar_lea.sflag [#allocation4], %s338
        %s340 = sand.u32 %s35, 1
        %s341 = smul.addr %s340, 16
        %s342 = scalar_lea.vmem [#allocation3], %s341
        %p343 = pneg %p48
        %p344 = pneg %p45
        %p345 = pneg %p69
        %p346 = pneg %p66
        %p347 = pneg %p90
        %p348 = pneg %p87
        %p349 = pneg %p111
        %p350 = pneg %p108
        %p351 = pneg %p132
        %p352 = pneg %p129
        %p353 = pneg %p153
        %p354 = pneg %p150
        %p355 = pneg %p174
        %p356 = pneg %p171
        %p357 = pneg %p195
        %p358 = pneg %p192
        %p359 = pneg %p221
        %p360 = pneg %p218
        %s361 = sand.u32 %s208, 1
        %s362 = scalar_lea.sflag [#allocation5], %s361
        %s363 = sand.u32 %s208, 1
        %s364 = smul.addr %s363, 16
        %s365 = scalar_lea.vmem [#allocation11], %s364
        %v366 = vld [vmem:[%s321] sm:$0xff]
        %v367 = vld [vmem:[%s321 + $0x8] sm:$0xff]
        %v368 = vadd.f32 %v366, %v367
        %369 = vadd.xlane.f32.xlu0 %v368
        %v370 = vpop.xlane.xlu0 %369
        %v371 = vrcp.pop 256.0
        %v372 = vmul.f32 %v370, %v371
        %v373 = vsub.f32 %v366, %v372
        %v374 = vsub.f32 %v367, %v372
        %v375 = vmul.f32 %v373, %v373
        %v376 = vmul.f32 %v374, %v374
        %v377 = vadd.f32 %v375, %v376
        %378 = vadd.xlane.f32.xlu0 %v377
        %v379 = vpop.xlane.xlu0 %378
        %v380 = vmul.f32 %v379, 0.003921569
        %v381 = vrsqrt.pop %v380
        %v382 = vmul.f32 %v380, %v381
        %vm383 = vcmp.eq.f32.partialorder %v380, inf
        %v384 = vsel %vm383, %v380, %v382
        %vm385 = vcmp.eq.f32.partialorder %v380, 0.0
        %v386 = vand.u32 %v380, 2147483648
        %v387 = vsel %vm385, %v386, %v384
        %v388 = vadd.f32 %v387, 1e-06
        %v389 = vrcp.pop %v388
        %v390 = vld [vmem:[%s1] sm:$0x3]
        %v391 = vmul.f32 %v373, %v389
        %v392 = vmul.f32 %v374, %v389
        %v394 = vlaneseq
        %v395 = vshrl.u32 %v394, 7
        %v396 = vsub.s32 0, %v395
        %v397 = vrot.slane %v390, %v396
        %v398 = vlaneseq
        %v399 = vshrl.u32 %v398, 7
        %v400 = vsub.s32 1, %v399
        %v401 = vrot.slane %v390, %v400
        %v404 = vmul.f32 %v397, %v391
        %v405 = vmul.f32 %v401, %v392
        %v406 = vld [vmem:[%s2] sm:$0x3]
        %v408 = vlaneseq
        %v409 = vshrl.u32 %v408, 7
        %v410 = vsub.s32 0, %v409
        %v411 = vrot.slane %v406, %v410
        %v412 = vlaneseq
        %v413 = vshrl.u32 %v412, 7
        %v414 = vsub.s32 1, %v413
        %v415 = vrot.slane %v406, %v414
        %v418 = vadd.f32 %v404, %v411
        %v419 = vadd.f32 %v405, %v415
        %v420 = vmul.f32 %v419, 0.5
        %v421 = vtanh.pop %v420
        %v422 = vadd.f32 %v421, 1.0
        %v423 = vmul.f32 %v422, 0.5
        %v424 = vmul.f32 %v418, %v423
        %v425 = vld [vmem:[#allocation6] sm:$0xff]
        %v426 = vld [vmem:[#allocation6 + $0x8] sm:$0xff]
        %v427 = vld [vmem:[#allocation6 + $0x10] sm:$0xff]
        %v428 = vld [vmem:[#allocation6 + $0x18] sm:$0xff]
        %v429 = vld [vmem:[#allocation6 + $0x20] sm:$0xff]
        %v430 = vld [vmem:[#allocation6 + $0x28] sm:$0xff]
        %v431 = vld [vmem:[#allocation6 + $0x30] sm:$0xff]
        %v432 = vld [vmem:[#allocation6 + $0x38] sm:$0xff]
        %v433 = vld [vmem:[#allocation6 + $0x40] sm:$0xff]
        %v434 = vld [vmem:[#allocation6 + $0x48] sm:$0xff]
        %v435 = vld [vmem:[#allocation6 + $0x50] sm:$0xff]
        %v436 = vld [vmem:[#allocation6 + $0x58] sm:$0xff]
        %v437 = vld [vmem:[#allocation6 + $0x60] sm:$0xff]
        %v438 = vld [vmem:[#allocation6 + $0x68] sm:$0xff]
        %v439 = vld [vmem:[#allocation6 + $0x70] sm:$0xff]
        %v440 = vld [vmem:[#allocation6 + $0x78] sm:$0xff]
        %v441 = vld [vmem:[#allocation6 + $0x80] sm:$0xff]
        %v442 = vld [vmem:[#allocation6 + $0x88] sm:$0xff]
        %v443 = vld [vmem:[#allocation6 + $0x90] sm:$0xff]
        %v444 = vld [vmem:[#allocation6 + $0x98] sm:$0xff]
        %v445 = vld [vmem:[#allocation6 + $0xa0] sm:$0xff]
        %v446 = vld [vmem:[#allocation6 + $0xa8] sm:$0xff]
        %v447 = vld [vmem:[#allocation6 + $0xb0] sm:$0xff]
        %v448 = vld [vmem:[#allocation6 + $0xb8] sm:$0xff]
        %v449 = vld [vmem:[#allocation6 + $0xc0] sm:$0xff]
        %v450 = vld [vmem:[#allocation6 + $0xc8] sm:$0xff]
        %v451 = vld [vmem:[#allocation6 + $0xd0] sm:$0xff]
        %v452 = vld [vmem:[#allocation6 + $0xd8] sm:$0xff]
        %v453 = vld [vmem:[#allocation6 + $0xe0] sm:$0xff]
        %v454 = vld [vmem:[#allocation6 + $0xe8] sm:$0xff]
        %v455 = vld [vmem:[#allocation6 + $0xf0] sm:$0xff]
        %v456 = vld [vmem:[#allocation6 + $0xf8] sm:$0xff]
        %v457 = vld [vmem:[%s4] sm:$0x3]
        %v459 = vlaneseq
        %v460 = vshrl.u32 %v459, 7
        %v461 = vsub.s32 0, %v460
        %v462 = vrot.slane %v457, %v461
        %v463 = vlaneseq
        %v464 = vshrl.u32 %v463, 7
        %v465 = vsub.s32 1, %v464
        %v466 = vrot.slane %v457, %v465
        %469 = vmatprep.subr.mxu0 %v426
        %470 = vmatpush1.msra.mxu0 %v425
        %471 = vmatprep.subr.mxu0 %v428
        %472 = vmatpush1.msra.mxu0 %v427
        %473 = vmatprep.subr.mxu0 %v430
        %474 = vmatpush1.msra.mxu0 %v429
        %475 = vmatprep.subr.mxu0 %v432
        %476 = vmatpush1.msra.mxu0 %v431
        %477 = vmatprep.subr.mxu0 %v434
        %478 = vmatpush1.msra.mxu0 %v433
        %479 = vmatprep.subr.mxu0 %v436
        %480 = vmatpush1.msra.mxu0 %v435
        %481 = vmatprep.subr.mxu0 %v438
        %482 = vmatpush1.msra.mxu0 %v437
        %483 = vmatprep.subr.mxu0 %v440
        %484 = vmatpush1.msra.mxu0 %v439
        %485 = vmatprep.subr.mxu0 %v442
        %486 = vmatpush1.msra.mxu0 %v441
        %487 = vmatprep.subr.mxu0 %v444
        %488 = vmatpush1.msra.mxu0 %v443
        %489 = vmatprep.subr.mxu0 %v446
        %490 = vmatpush1.msra.mxu0 %v445
        %491 = vmatprep.subr.mxu0 %v448
        %492 = vmatpush1.msra.mxu0 %v447
        %493 = vmatprep.subr.mxu0 %v450
        %494 = vmatpush1.msra.mxu0 %v449
        %495 = vmatprep.subr.mxu0 %v452
        %496 = vmatpush1.msra.mxu0 %v451
        %497 = vmatprep.subr.mxu0 %v454
        %498 = vmatpush1.msra.mxu0 %v453
        %499 = vmatprep.subr.mxu0 %v456
        %500 = vmatpush1.msra.mxu0 %v455
        %501 = vmatprep.subr.mxu0 0.0
        %502 = vmatpush1.msra.mxu0 0.0
        %503 = vmatprep.subr.mxu0 0.0
        %504 = vmatpush1.msra.mxu0 0.0
        %505 = vmatprep.subr.mxu0 0.0
        %506 = vmatpush1.msra.mxu0 0.0
        %507 = vmatprep.subr.mxu0 0.0
        %508 = vmatpush1.msra.mxu0 0.0
        %509 = vmatprep.subr.mxu0 0.0
        %510 = vmatpush1.msra.mxu0 0.0
        %511 = vmatprep.subr.mxu0 0.0
        %512 = vmatpush1.msra.mxu0 0.0
        %513 = vmatprep.subr.mxu0 0.0
        %514 = vmatpush1.msra.mxu0 0.0
        %515 = vmatprep.subr.mxu0 0.0
        %516 = vmatpush1.msra.mxu0 0.0
        %517 = vmatprep.subr.mxu0 0.0
        %518 = vmatpush1.msra.mxu0 0.0
        %519 = vmatprep.subr.mxu0 0.0
        %520 = vmatpush1.msra.mxu0 0.0
        %521 = vmatprep.subr.mxu0 0.0
        %522 = vmatpush1.msra.mxu0 0.0
        %523 = vmatprep.subr.mxu0 0.0
        %524 = vmatpush1.msra.mxu0 0.0
        %525 = vmatprep.subr.mxu0 0.0
        %526 = vmatpush1.msra.mxu0 0.0
        %527 = vmatprep.subr.mxu0 0.0
        %528 = vmatpush1.msra.mxu0 0.0
        %529 = vmatprep.subr.mxu0 0.0
        %530 = vmatpush1.msra.mxu0 0.0
        %531 = vmatprep.subr.mxu0 0.0
        %532 = vmatpush1.msra.mxu0 0.0
        %533 = vmatprep.mubr.f32.mxu0 0.0
        %534 = vmatmul.mubr.f32.gmra.mrb[0].mxu0 %v424
        %v535 = vpop.f32.mrb[0].mxu0
        %v536 = vadd.f32 %v462, %v535
        %v537 = vpop.f32.mrb[0].mxu0
        %v538 = vadd.f32 %v466, %v537
        %539 = vdwg.mxu0
        %v540 = vld [vmem:[%s7] sm:$0xff]
        %v541 = vld [vmem:[#allocation8] sm:$0xff]
        %v542 = vld [vmem:[#allocation8 + $0x8] sm:$0xff]
        %v543 = vld [vmem:[#allocation8 + $0x10] sm:$0xff]
        %v544 = vld [vmem:[#allocation8 + $0x18] sm:$0xff]
        %v545 = vld [vmem:[#allocation8 + $0x20] sm:$0xff]
        %v546 = vld [vmem:[#allocation8 + $0x28] sm:$0xff]
        %v547 = vld [vmem:[#allocation8 + $0x30] sm:$0xff]
        %v548 = vld [vmem:[#allocation8 + $0x38] sm:$0xff]
        %v549 = vld [vmem:[#allocation8 + $0x40] sm:$0xff]
        %v550 = vld [vmem:[#allocation8 + $0x48] sm:$0xff]
        %v551 = vld [vmem:[#allocation8 + $0x50] sm:$0xff]
        %v552 = vld [vmem:[#allocation8 + $0x58] sm:$0xff]
        %v553 = vld [vmem:[#allocation8 + $0x60] sm:$0xff]
        %v554 = vld [vmem:[#allocation8 + $0x68] sm:$0xff]
        %v555 = vld [vmem:[#allocation8 + $0x70] sm:$0xff]
        %v556 = vld [vmem:[#allocation8 + $0x78] sm:$0xff]
        %v557 = vld [vmem:[#allocation8 + $0x80] sm:$0xff]
        %v558 = vld [vmem:[#allocation8 + $0x88] sm:$0xff]
        %v559 = vld [vmem:[#allocation8 + $0x90] sm:$0xff]
        %v560 = vld [vmem:[#allocation8 + $0x98] sm:$0xff]
        %v561 = vld [vmem:[#allocation8 + $0xa0] sm:$0xff]
        %v562 = vld [vmem:[#allocation8 + $0xa8] sm:$0xff]
        %v563 = vld [vmem:[#allocation8 + $0xb0] sm:$0xff]
        %v564 = vld [vmem:[#allocation8 + $0xb8] sm:$0xff]
        %v565 = vld [vmem:[#allocation8 + $0xc0] sm:$0xff]
        %v566 = vld [vmem:[#allocation8 + $0xc8] sm:$0xff]
        %v567 = vld [vmem:[#allocation8 + $0xd0] sm:$0xff]
        %v568 = vld [vmem:[#allocation8 + $0xd8] sm:$0xff]
        %v569 = vld [vmem:[#allocation8 + $0xe0] sm:$0xff]
        %v570 = vld [vmem:[#allocation8 + $0xe8] sm:$0xff]
        %v571 = vld [vmem:[#allocation8 + $0xf0] sm:$0xff]
        %v572 = vld [vmem:[#allocation8 + $0xf8] sm:$0xff]
        %v573 = vld [vmem:[#allocation8 + $0x100] sm:$0xff]
        %v574 = vld [vmem:[#allocation8 + $0x108] sm:$0xff]
        %v575 = vld [vmem:[#allocation8 + $0x110] sm:$0xff]
        %v576 = vld [vmem:[#allocation8 + $0x118] sm:$0xff]
        %v577 = vld [vmem:[#allocation8 + $0x120] sm:$0xff]
        %v578 = vld [vmem:[#allocation8 + $0x128] sm:$0xff]
        %v579 = vld [vmem:[#allocation8 + $0x130] sm:$0xff]
        %v580 = vld [vmem:[#allocation8 + $0x138] sm:$0xff]
        %v581 = vld [vmem:[#allocation8 + $0x140] sm:$0xff]
        %v582 = vld [vmem:[#allocation8 + $0x148] sm:$0xff]
        %v583 = vld [vmem:[#allocation8 + $0x150] sm:$0xff]
        %v584 = vld [vmem:[#allocation8 + $0x158] sm:$0xff]
        %v585 = vld [vmem:[#allocation8 + $0x160] sm:$0xff]
        %v586 = vld [vmem:[#allocation8 + $0x168] sm:$0xff]
        %v587 = vld [vmem:[#allocation8 + $0x170] sm:$0xff]
        %v588 = vld [vmem:[#allocation8 + $0x178] sm:$0xff]
        %v589 = vld [vmem:[#allocation8 + $0x180] sm:$0xff]
        %v590 = vld [vmem:[#allocation8 + $0x188] sm:$0xff]
        %v591 = vld [vmem:[#allocation8 + $0x190] sm:$0xff]
        %v592 = vld [vmem:[#allocation8 + $0x198] sm:$0xff]
        %v593 = vld [vmem:[#allocation8 + $0x1a0] sm:$0xff]
        %v594 = vld [vmem:[#allocation8 + $0x1a8] sm:$0xff]
        %v595 = vld [vmem:[#allocation8 + $0x1b0] sm:$0xff]
        %v596 = vld [vmem:[#allocation8 + $0x1b8] sm:$0xff]
        %v597 = vld [vmem:[#allocation8 + $0x1c0] sm:$0xff]
        %v598 = vld [vmem:[#allocation8 + $0x1c8] sm:$0xff]
        %v599 = vld [vmem:[#allocation8 + $0x1d0] sm:$0xff]
        %v600 = vld [vmem:[#allocation8 + $0x1d8] sm:$0xff]
        %v601 = vld [vmem:[#allocation8 + $0x1e0] sm:$0xff]
        %v602 = vld [vmem:[#allocation8 + $0x1e8] sm:$0xff]
        %v603 = vld [vmem:[#allocation8 + $0x1f0] sm:$0xff]
        %v604 = vld [vmem:[#allocation8 + $0x1f8] sm:$0xff]
        %v605 = vld [vmem:[#allocation8 + $0x200] sm:$0xff]
        %v606 = vld [vmem:[#allocation8 + $0x208] sm:$0xff]
        %v607 = vld [vmem:[#allocation8 + $0x210] sm:$0xff]
        %v608 = vld [vmem:[#allocation8 + $0x218] sm:$0xff]
        %v609 = vld [vmem:[#allocation8 + $0x220] sm:$0xff]
        %v610 = vld [vmem:[#allocation8 + $0x228] sm:$0xff]
        %v611 = vld [vmem:[#allocation8 + $0x230] sm:$0xff]
        %v612 = vld [vmem:[#allocation8 + $0x238] sm:$0xff]
        %v613 = vld [vmem:[#allocation8 + $0x240] sm:$0xff]
        %v614 = vld [vmem:[#allocation8 + $0x248] sm:$0xff]
        %v615 = vld [vmem:[#allocation8 + $0x250] sm:$0xff]
        %v616 = vld [vmem:[#allocation8 + $0x258] sm:$0xff]
        %v617 = vld [vmem:[#allocation8 + $0x260] sm:$0xff]
        %v618 = vld [vmem:[#allocation8 + $0x268] sm:$0xff]
        %v619 = vld [vmem:[#allocation8 + $0x270] sm:$0xff]
        %v620 = vld [vmem:[#allocation8 + $0x278] sm:$0xff]
        %v621 = vld [vmem:[#allocation8 + $0x280] sm:$0xff]
        %v622 = vld [vmem:[#allocation8 + $0x288] sm:$0xff]
        %v623 = vld [vmem:[#allocation8 + $0x290] sm:$0xff]
        %v624 = vld [vmem:[#allocation8 + $0x298] sm:$0xff]
        %v625 = vld [vmem:[#allocation8 + $0x2a0] sm:$0xff]
        %v626 = vld [vmem:[#allocation8 + $0x2a8] sm:$0xff]
        %v627 = vld [vmem:[#allocation8 + $0x2b0] sm:$0xff]
        %v628 = vld [vmem:[#allocation8 + $0x2b8] sm:$0xff]
        %v629 = vld [vmem:[#allocation8 + $0x2c0] sm:$0xff]
        %v630 = vld [vmem:[#allocation8 + $0x2c8] sm:$0xff]
        %v631 = vld [vmem:[#allocation8 + $0x2d0] sm:$0xff]
        %v632 = vld [vmem:[#allocation8 + $0x2d8] sm:$0xff]
        %v633 = vld [vmem:[#allocation8 + $0x2e0] sm:$0xff]
        %v634 = vld [vmem:[#allocation8 + $0x2e8] sm:$0xff]
        %v635 = vld [vmem:[#allocation8 + $0x2f0] sm:$0xff]
        %v636 = vld [vmem:[#allocation8 + $0x2f8] sm:$0xff]
        %v637 = vld [vmem:[#allocation8 + $0x300] sm:$0xff]
        %v638 = vld [vmem:[#allocation8 + $0x308] sm:$0xff]
        %v639 = vld [vmem:[#allocation8 + $0x310] sm:$0xff]
        %v640 = vld [vmem:[#allocation8 + $0x318] sm:$0xff]
        %v641 = vld [vmem:[#allocation8 + $0x320] sm:$0xff]
        %v642 = vld [vmem:[#allocation8 + $0x328] sm:$0xff]
        %v643 = vld [vmem:[#allocation8 + $0x330] sm:$0xff]
        %v644 = vld [vmem:[#allocation8 + $0x338] sm:$0xff]
        %v645 = vld [vmem:[#allocation8 + $0x340] sm:$0xff]
        %v646 = vld [vmem:[#allocation8 + $0x348] sm:$0xff]
        %v647 = vld [vmem:[#allocation8 + $0x350] sm:$0xff]
        %v648 = vld [vmem:[#allocation8 + $0x358] sm:$0xff]
        %v649 = vld [vmem:[#allocation8 + $0x360] sm:$0xff]
        %v650 = vld [vmem:[#allocation8 + $0x368] sm:$0xff]
        %v651 = vld [vmem:[#allocation8 + $0x370] sm:$0xff]
        %v652 = vld [vmem:[#allocation8 + $0x378] sm:$0xff]
        %v653 = vld [vmem:[#allocation8 + $0x380] sm:$0xff]
        %v654 = vld [vmem:[#allocation8 + $0x388] sm:$0xff]
        %v655 = vld [vmem:[#allocation8 + $0x390] sm:$0xff]
        %v656 = vld [vmem:[#allocation8 + $0x398] sm:$0xff]
        %v657 = vld [vmem:[#allocation8 + $0x3a0] sm:$0xff]
        %v658 = vld [vmem:[#allocation8 + $0x3a8] sm:$0xff]
        %v659 = vld [vmem:[#allocation8 + $0x3b0] sm:$0xff]
        %v660 = vld [vmem:[#allocation8 + $0x3b8] sm:$0xff]
        %v661 = vld [vmem:[#allocation8 + $0x3c0] sm:$0xff]
        %v662 = vld [vmem:[#allocation8 + $0x3c8] sm:$0xff]
        %v663 = vld [vmem:[#allocation8 + $0x3d0] sm:$0xff]
        %v664 = vld [vmem:[#allocation8 + $0x3d8] sm:$0xff]
        %v665 = vld [vmem:[#allocation8 + $0x3e0] sm:$0xff]
        %v666 = vld [vmem:[#allocation8 + $0x3e8] sm:$0xff]
        %v667 = vld [vmem:[#allocation8 + $0x3f0] sm:$0xff]
        %v668 = vld [vmem:[#allocation8 + $0x3f8] sm:$0xff]
        %v669 = vld [vmem:[#allocation8 + $0x400] sm:$0xff]
        %v670 = vld [vmem:[#allocation8 + $0x408] sm:$0xff]
        %v671 = vld [vmem:[#allocation8 + $0x410] sm:$0xff]
        %v672 = vld [vmem:[#allocation8 + $0x418] sm:$0xff]
        %v673 = vld [vmem:[#allocation8 + $0x420] sm:$0xff]
        %v674 = vld [vmem:[#allocation8 + $0x428] sm:$0xff]
        %v675 = vld [vmem:[#allocation8 + $0x430] sm:$0xff]
        %v676 = vld [vmem:[#allocation8 + $0x438] sm:$0xff]
        %v677 = vld [vmem:[#allocation8 + $0x440] sm:$0xff]
        %v678 = vld [vmem:[#allocation8 + $0x448] sm:$0xff]
        %v679 = vld [vmem:[#allocation8 + $0x450] sm:$0xff]
        %v680 = vld [vmem:[#allocation8 + $0x458] sm:$0xff]
        %v681 = vld [vmem:[#allocation8 + $0x460] sm:$0xff]
        %v682 = vld [vmem:[#allocation8 + $0x468] sm:$0xff]
        %v683 = vld [vmem:[#allocation8 + $0x470] sm:$0xff]
        %v684 = vld [vmem:[#allocation8 + $0x478] sm:$0xff]
        %v685 = vld [vmem:[#allocation8 + $0x480] sm:$0xff]
        %v686 = vld [vmem:[#allocation8 + $0x488] sm:$0xff]
        %v687 = vld [vmem:[#allocation8 + $0x490] sm:$0xff]
        %v688 = vld [vmem:[#allocation8 + $0x498] sm:$0xff]
        %v689 = vld [vmem:[#allocation8 + $0x4a0] sm:$0xff]
        %v690 = vld [vmem:[#allocation8 + $0x4a8] sm:$0xff]
        %v691 = vld [vmem:[#allocation8 + $0x4b0] sm:$0xff]
        %v692 = vld [vmem:[#allocation8 + $0x4b8] sm:$0xff]
        %v693 = vld [vmem:[#allocation8 + $0x4c0] sm:$0xff]
        %v694 = vld [vmem:[#allocation8 + $0x4c8] sm:$0xff]
        %v695 = vld [vmem:[#allocation8 + $0x4d0] sm:$0xff]
        %v696 = vld [vmem:[#allocation8 + $0x4d8] sm:$0xff]
        %v697 = vld [vmem:[#allocation8 + $0x4e0] sm:$0xff]
        %v698 = vld [vmem:[#allocation8 + $0x4e8] sm:$0xff]
        %v699 = vld [vmem:[#allocation8 + $0x4f0] sm:$0xff]
        %v700 = vld [vmem:[#allocation8 + $0x4f8] sm:$0xff]
        %v701 = vld [vmem:[#allocation8 + $0x500] sm:$0xff]
        %v702 = vld [vmem:[#allocation8 + $0x508] sm:$0xff]
        %v703 = vld [vmem:[#allocation8 + $0x510] sm:$0xff]
        %v704 = vld [vmem:[#allocation8 + $0x518] sm:$0xff]
        %v705 = vld [vmem:[#allocation8 + $0x520] sm:$0xff]
        %v706 = vld [vmem:[#allocation8 + $0x528] sm:$0xff]
        %v707 = vld [vmem:[#allocation8 + $0x530] sm:$0xff]
        %v708 = vld [vmem:[#allocation8 + $0x538] sm:$0xff]
        %v709 = vld [vmem:[#allocation8 + $0x540] sm:$0xff]
        %v710 = vld [vmem:[#allocation8 + $0x548] sm:$0xff]
        %v711 = vld [vmem:[#allocation8 + $0x550] sm:$0xff]
        %v712 = vld [vmem:[#allocation8 + $0x558] sm:$0xff]
        %v713 = vld [vmem:[#allocation8 + $0x560] sm:$0xff]
        %v714 = vld [vmem:[#allocation8 + $0x568] sm:$0xff]
        %v715 = vld [vmem:[#allocation8 + $0x570] sm:$0xff]
        %v716 = vld [vmem:[#allocation8 + $0x578] sm:$0xff]
        %v717 = vld [vmem:[#allocation8 + $0x580] sm:$0xff]
        %v718 = vld [vmem:[#allocation8 + $0x588] sm:$0xff]
        %v719 = vld [vmem:[#allocation8 + $0x590] sm:$0xff]
        %v720 = vld [vmem:[#allocation8 + $0x598] sm:$0xff]
        %v721 = vld [vmem:[#allocation8 + $0x5a0] sm:$0xff]
        %v722 = vld [vmem:[#allocation8 + $0x5a8] sm:$0xff]
        %v723 = vld [vmem:[#allocation8 + $0x5b0] sm:$0xff]
        %v724 = vld [vmem:[#allocation8 + $0x5b8] sm:$0xff]
        %v725 = vld [vmem:[#allocation8 + $0x5c0] sm:$0xff]
        %v726 = vld [vmem:[#allocation8 + $0x5c8] sm:$0xff]
        %v727 = vld [vmem:[#allocation8 + $0x5d0] sm:$0xff]
        %v728 = vld [vmem:[#allocation8 + $0x5d8] sm:$0xff]
        %v729 = vld [vmem:[#allocation8 + $0x5e0] sm:$0xff]
        %v730 = vld [vmem:[#allocation8 + $0x5e8] sm:$0xff]
        %v731 = vld [vmem:[#allocation8 + $0x5f0] sm:$0xff]
        %v732 = vld [vmem:[#allocation8 + $0x5f8] sm:$0xff]
        %v733 = vld [vmem:[#allocation8 + $0x600] sm:$0xff]
        %v734 = vld [vmem:[#allocation8 + $0x608] sm:$0xff]
        %v735 = vld [vmem:[#allocation8 + $0x610] sm:$0xff]
        %v736 = vld [vmem:[#allocation8 + $0x618] sm:$0xff]
        %v737 = vld [vmem:[#allocation8 + $0x620] sm:$0xff]
        %v738 = vld [vmem:[#allocation8 + $0x628] sm:$0xff]
        %v739 = vld [vmem:[#allocation8 + $0x630] sm:$0xff]
        %v740 = vld [vmem:[#allocation8 + $0x638] sm:$0xff]
        %v741 = vld [vmem:[#allocation8 + $0x640] sm:$0xff]
        %v742 = vld [vmem:[#allocation8 + $0x648] sm:$0xff]
        %v743 = vld [vmem:[#allocation8 + $0x650] sm:$0xff]
        %v744 = vld [vmem:[#allocation8 + $0x658] sm:$0xff]
        %v745 = vld [vmem:[#allocation8 + $0x660] sm:$0xff]
        %v746 = vld [vmem:[#allocation8 + $0x668] sm:$0xff]
        %v747 = vld [vmem:[#allocation8 + $0x670] sm:$0xff]
        %v748 = vld [vmem:[#allocation8 + $0x678] sm:$0xff]
        %v749 = vld [vmem:[#allocation8 + $0x680] sm:$0xff]
        %v750 = vld [vmem:[#allocation8 + $0x688] sm:$0xff]
        %v751 = vld [vmem:[#allocation8 + $0x690] sm:$0xff]
        %v752 = vld [vmem:[#allocation8 + $0x698] sm:$0xff]
        %v753 = vld [vmem:[#allocation8 + $0x6a0] sm:$0xff]
        %v754 = vld [vmem:[#allocation8 + $0x6a8] sm:$0xff]
        %v755 = vld [vmem:[#allocation8 + $0x6b0] sm:$0xff]
        %v756 = vld [vmem:[#allocation8 + $0x6b8] sm:$0xff]
        %v757 = vld [vmem:[#allocation8 + $0x6c0] sm:$0xff]
        %v758 = vld [vmem:[#allocation8 + $0x6c8] sm:$0xff]
        %v759 = vld [vmem:[#allocation8 + $0x6d0] sm:$0xff]
        %v760 = vld [vmem:[#allocation8 + $0x6d8] sm:$0xff]
        %v761 = vld [vmem:[#allocation8 + $0x6e0] sm:$0xff]
        %v762 = vld [vmem:[#allocation8 + $0x6e8] sm:$0xff]
        %v763 = vld [vmem:[#allocation8 + $0x6f0] sm:$0xff]
        %v764 = vld [vmem:[#allocation8 + $0x6f8] sm:$0xff]
        %v765 = vld [vmem:[#allocation8 + $0x700] sm:$0xff]
        %v766 = vld [vmem:[#allocation8 + $0x708] sm:$0xff]
        %v767 = vld [vmem:[#allocation8 + $0x710] sm:$0xff]
        %v768 = vld [vmem:[#allocation8 + $0x718] sm:$0xff]
        %v769 = vld [vmem:[#allocation8 + $0x720] sm:$0xff]
        %v770 = vld [vmem:[#allocation8 + $0x728] sm:$0xff]
        %v771 = vld [vmem:[#allocation8 + $0x730] sm:$0xff]
        %v772 = vld [vmem:[#allocation8 + $0x738] sm:$0xff]
        %v773 = vld [vmem:[#allocation8 + $0x740] sm:$0xff]
        %v774 = vld [vmem:[#allocation8 + $0x748] sm:$0xff]
        %v775 = vld [vmem:[#allocation8 + $0x750] sm:$0xff]
        %v776 = vld [vmem:[#allocation8 + $0x758] sm:$0xff]
        %v777 = vld [vmem:[#allocation8 + $0x760] sm:$0xff]
        %v778 = vld [vmem:[#allocation8 + $0x768] sm:$0xff]
        %v779 = vld [vmem:[#allocation8 + $0x770] sm:$0xff]
        %v780 = vld [vmem:[#allocation8 + $0x778] sm:$0xff]
        %v781 = vld [vmem:[#allocation8 + $0x780] sm:$0xff]
        %v782 = vld [vmem:[#allocation8 + $0x788] sm:$0xff]
        %v783 = vld [vmem:[#allocation8 + $0x790] sm:$0xff]
        %v784 = vld [vmem:[#allocation8 + $0x798] sm:$0xff]
        %v785 = vld [vmem:[#allocation8 + $0x7a0] sm:$0xff]
        %v786 = vld [vmem:[#allocation8 + $0x7a8] sm:$0xff]
        %v787 = vld [vmem:[#allocation8 + $0x7b0] sm:$0xff]
        %v788 = vld [vmem:[#allocation8 + $0x7b8] sm:$0xff]
        %v789 = vld [vmem:[#allocation8 + $0x7c0] sm:$0xff]
        %v790 = vld [vmem:[#allocation8 + $0x7c8] sm:$0xff]
        %v791 = vld [vmem:[#allocation8 + $0x7d0] sm:$0xff]
        %v792 = vld [vmem:[#allocation8 + $0x7d8] sm:$0xff]
        %v793 = vld [vmem:[#allocation8 + $0x7e0] sm:$0xff]
        %v794 = vld [vmem:[#allocation8 + $0x7e8] sm:$0xff]
        %v795 = vld [vmem:[#allocation8 + $0x7f0] sm:$0xff]
        %v796 = vld [vmem:[#allocation8 + $0x7f8] sm:$0xff]
        %v798 = vlaneseq
        %v799 = vshrl.u32 %v798, 7
        %v800 = vsub.s32 0, %v799
        %v801 = vrot.slane %v540, %v800
        %v802 = vlaneseq
        %v803 = vshrl.u32 %v802, 7
        %v804 = vsub.s32 1, %v803
        %v805 = vrot.slane %v540, %v804
        %v806 = vlaneseq
        %v807 = vshrl.u32 %v806, 7
        %v808 = vsub.s32 2, %v807
        %v809 = vrot.slane %v540, %v808
        %v810 = vlaneseq
        %v811 = vshrl.u32 %v810, 7
        %v812 = vsub.s32 3, %v811
        %v813 = vrot.slane %v540, %v812
        %v814 = vlaneseq
        %v815 = vshrl.u32 %v814, 7
        %v816 = vsub.s32 4, %v815
        %v817 = vrot.slane %v540, %v816
        %v818 = vlaneseq
        %v819 = vshrl.u32 %v818, 7
        %v820 = vsub.s32 5, %v819
        %v821 = vrot.slane %v540, %v820
        %v822 = vlaneseq
        %v823 = vshrl.u32 %v822, 7
        %v824 = vsub.s32 6, %v823
        %v825 = vrot.slane %v540, %v824
        %v826 = vlaneseq
        %v827 = vshrl.u32 %v826, 7
        %v828 = vsub.s32 7, %v827
        %v829 = vrot.slane %v540, %v828
        %838 = vmatprep.subr.mxu0 %v542
        %839 = vmatpush1.msra.mxu0 %v541
        %840 = vmatprep.subr.mxu0 %v550
        %841 = vmatpush1.msra.mxu0 %v549
        %842 = vmatprep.subr.mxu0 %v558
        %843 = vmatpush1.msra.mxu0 %v557
        %844 = vmatprep.subr.mxu0 %v566
        %845 = vmatpush1.msra.mxu0 %v565
        %846 = vmatprep.subr.mxu0 %v574
        %847 = vmatpush1.msra.mxu0 %v573
        %848 = vmatprep.subr.mxu0 %v582
        %849 = vmatpush1.msra.mxu0 %v581
        %850 = vmatprep.subr.mxu0 %v590
        %851 = vmatpush1.msra.mxu0 %v589
        %852 = vmatprep.subr.mxu0 %v598
        %853 = vmatpush1.msra.mxu0 %v597
        %854 = vmatprep.subr.mxu0 %v606
        %855 = vmatpush1.msra.mxu0 %v605
        %856 = vmatprep.subr.mxu0 %v614
        %857 = vmatpush1.msra.mxu0 %v613
        %858 = vmatprep.subr.mxu0 %v622
        %859 = vmatpush1.msra.mxu0 %v621
        %860 = vmatprep.subr.mxu0 %v630
        %861 = vmatpush1.msra.mxu0 %v629
        %862 = vmatprep.subr.mxu0 %v638
        %863 = vmatpush1.msra.mxu0 %v637
        %864 = vmatprep.subr.mxu0 %v646
        %865 = vmatpush1.msra.mxu0 %v645
        %866 = vmatprep.subr.mxu0 %v654
        %867 = vmatpush1.msra.mxu0 %v653
        %868 = vmatprep.subr.mxu0 %v662
        %869 = vmatpush1.msra.mxu0 %v661
        %870 = vmatprep.subr.mxu0 %v670
        %871 = vmatpush1.msra.mxu0 %v669
        %872 = vmatprep.subr.mxu0 %v678
        %873 = vmatpush1.msra.mxu0 %v677
        %874 = vmatprep.subr.mxu0 %v686
        %875 = vmatpush1.msra.mxu0 %v685
        %876 = vmatprep.subr.mxu0 %v694
        %877 = vmatpush1.msra.mxu0 %v693
        %878 = vmatprep.subr.mxu0 %v702
        %879 = vmatpush1.msra.mxu0 %v701
        %880 = vmatprep.subr.mxu0 %v710
        %881 = vmatpush1.msra.mxu0 %v709
        %882 = vmatprep.subr.mxu0 %v718
        %883 = vmatpush1.msra.mxu0 %v717
        %884 = vmatprep.subr.mxu0 %v726
        %885 = vmatpush1.msra.mxu0 %v725
        %886 = vmatprep.subr.mxu0 %v734
        %887 = vmatpush1.msra.mxu0 %v733
        %888 = vmatprep.subr.mxu0 %v742
        %889 = vmatpush1.msra.mxu0 %v741
        %890 = vmatprep.subr.mxu0 %v750
        %891 = vmatpush1.msra.mxu0 %v749
        %892 = vmatprep.subr.mxu0 %v758
        %893 = vmatpush1.msra.mxu0 %v757
        %894 = vmatprep.subr.mxu0 %v766
        %895 = vmatpush1.msra.mxu0 %v765
        %896 = vmatprep.subr.mxu0 %v774
        %897 = vmatpush1.msra.mxu0 %v773
        %898 = vmatprep.subr.mxu0 %v782
        %899 = vmatpush1.msra.mxu0 %v781
        %900 = vmatprep.subr.mxu0 %v790
        %901 = vmatpush1.msra.mxu0 %v789
        %902 = vmatprep.mubr.f32.mxu0 %v538
        %903 = vmatmul.mubr.f32.gmra.mrb[0].mxu0 %v536
        %v904 = vpop.f32.mrb[0].mxu0
        %v905 = vadd.f32 %v801, %v904
        %v906 = vpop.f32.mrb[0].mxu0
        %v907 = vadd.f32 %v805, %v906
        %908 = vdwg.mxu0
        %909 = vmatprep.subr.mxu0 %v544
        %910 = vmatpush1.msra.mxu0 %v543
        %911 = vmatprep.subr.mxu0 %v552
        %912 = vmatpush1.msra.mxu0 %v551
        %913 = vmatprep.subr.mxu0 %v560
        %914 = vmatpush1.msra.mxu0 %v559
        %915 = vmatprep.subr.mxu0 %v568
        %916 = vmatpush1.msra.mxu0 %v567
        %917 = vmatprep.subr.mxu0 %v576
        %918 = vmatpush1.msra.mxu0 %v575
        %919 = vmatprep.subr.mxu0 %v584
        %920 = vmatpush1.msra.mxu0 %v583
        %921 = vmatprep.subr.mxu0 %v592
        %922 = vmatpush1.msra.mxu0 %v591
        %923 = vmatprep.subr.mxu0 %v600
        %924 = vmatpush1.msra.mxu0 %v599
        %925 = vmatprep.subr.mxu0 %v608
        %926 = vmatpush1.msra.mxu0 %v607
        %927 = vmatprep.subr.mxu0 %v616
        %928 = vmatpush1.msra.mxu0 %v615
        %929 = vmatprep.subr.mxu0 %v624
        %930 = vmatpush1.msra.mxu0 %v623
        %931 = vmatprep.subr.mxu0 %v632
        %932 = vmatpush1.msra.mxu0 %v631
        %933 = vmatprep.subr.mxu0 %v640
        %934 = vmatpush1.msra.mxu0 %v639
        %935 = vmatprep.subr.mxu0 %v648
        %936 = vmatpush1.msra.mxu0 %v647
        %937 = vmatprep.subr.mxu0 %v656
        %938 = vmatpush1.msra.mxu0 %v655
        %939 = vmatprep.subr.mxu0 %v664
        %940 = vmatpush1.msra.mxu0 %v663
        %941 = vmatprep.subr.mxu0 %v672
        %942 = vmatpush1.msra.mxu0 %v671
        %943 = vmatprep.subr.mxu0 %v680
        %944 = vmatpush1.msra.mxu0 %v679
        %945 = vmatprep.subr.mxu0 %v688
        %946 = vmatpush1.msra.mxu0 %v687
        %947 = vmatprep.subr.mxu0 %v696
        %948 = vmatpush1.msra.mxu0 %v695
        %949 = vmatprep.subr.mxu0 %v704
        %950 = vmatpush1.msra.mxu0 %v703
        %951 = vmatprep.subr.mxu0 %v712
        %952 = vmatpush1.msra.mxu0 %v711
        %953 = vmatprep.subr.mxu0 %v720
        %954 = vmatpush1.msra.mxu0 %v719
        %955 = vmatprep.subr.mxu0 %v728
        %956 = vmatpush1.msra.mxu0 %v727
        %957 = vmatprep.subr.mxu0 %v736
        %958 = vmatpush1.msra.mxu0 %v735
        %959 = vmatprep.subr.mxu0 %v744
        %960 = vmatpush1.msra.mxu0 %v743
        %961 = vmatprep.subr.mxu0 %v752
        %962 = vmatpush1.msra.mxu0 %v751
        %963 = vmatprep.subr.mxu0 %v760
        %964 = vmatpush1.msra.mxu0 %v759
        %965 = vmatprep.subr.mxu0 %v768
        %966 = vmatpush1.msra.mxu0 %v767
        %967 = vmatprep.subr.mxu0 %v776
        %968 = vmatpush1.msra.mxu0 %v775
        %969 = vmatprep.subr.mxu0 %v784
        %970 = vmatpush1.msra.mxu0 %v783
        %971 = vmatprep.subr.mxu0 %v792
        %972 = vmatpush1.msra.mxu0 %v791
        %973 = vmatprep.mubr.f32.mxu0 %v538
        %974 = vmatmul.mubr.f32.gmra.mrb[0].mxu0 %v536
        %v975 = vpop.f32.mrb[0].mxu0
        %v976 = vadd.f32 %v809, %v975
        %v977 = vpop.f32.mrb[0].mxu0
        %v978 = vadd.f32 %v813, %v977
        %979 = vdwg.mxu0
        %980 = vmatprep.subr.mxu0 %v546
        %981 = vmatpush1.msra.mxu0 %v545
        %982 = vmatprep.subr.mxu0 %v554
        %983 = vmatpush1.msra.mxu0 %v553
        %984 = vmatprep.subr.mxu0 %v562
        %985 = vmatpush1.msra.mxu0 %v561
        %986 = vmatprep.subr.mxu0 %v570
        %987 = vmatpush1.msra.mxu0 %v569
        %988 = vmatprep.subr.mxu0 %v578
        %989 = vmatpush1.msra.mxu0 %v577
        %990 = vmatprep.subr.mxu0 %v586
        %991 = vmatpush1.msra.mxu0 %v585
        %992 = vmatprep.subr.mxu0 %v594
        %993 = vmatpush1.msra.mxu0 %v593
        %994 = vmatprep.subr.mxu0 %v602
        %995 = vmatpush1.msra.mxu0 %v601
        %996 = vmatprep.subr.mxu0 %v610
        %997 = vmatpush1.msra.mxu0 %v609
        %998 = vmatprep.subr.mxu0 %v618
        %999 = vmatpush1.msra.mxu0 %v617
        %1000 = vmatprep.subr.mxu0 %v626
        %1001 = vmatpush1.msra.mxu0 %v625
        %1002 = vmatprep.subr.mxu0 %v634
        %1003 = vmatpush1.msra.mxu0 %v633
        %1004 = vmatprep.subr.mxu0 %v642
        %1005 = vmatpush1.msra.mxu0 %v641
        %1006 = vmatprep.subr.mxu0 %v650
        %1007 = vmatpush1.msra.mxu0 %v649
        %1008 = vmatprep.subr.mxu0 %v658
        %1009 = vmatpush1.msra.mxu0 %v657
        %1010 = vmatprep.subr.mxu0 %v666
        %1011 = vmatpush1.msra.mxu0 %v665
        %1012 = vmatprep.subr.mxu0 %v674
        %1013 = vmatpush1.msra.mxu0 %v673
        %1014 = vmatprep.subr.mxu0 %v682
        %1015 = vmatpush1.msra.mxu0 %v681
        %1016 = vmatprep.subr.mxu0 %v690
        %1017 = vmatpush1.msra.mxu0 %v689
        %1018 = vmatprep.subr.mxu0 %v698
        %1019 = vmatpush1.msra.mxu0 %v697
        %1020 = vmatprep.subr.mxu0 %v706
        %1021 = vmatpush1.msra.mxu0 %v705
        %1022 = vmatprep.subr.mxu0 %v714
        %1023 = vmatpush1.msra.mxu0 %v713
        %1024 = vmatprep.subr.mxu0 %v722
        %1025 = vmatpush1.msra.mxu0 %v721
        %1026 = vmatprep.subr.mxu0 %v730
        %1027 = vmatpush1.msra.mxu0 %v729
        %1028 = vmatprep.subr.mxu0 %v738
        %1029 = vmatpush1.msra.mxu0 %v737
        %1030 = vmatprep.subr.mxu0 %v746
        %1031 = vmatpush1.msra.mxu0 %v745
        %1032 = vmatprep.subr.mxu0 %v754
        %1033 = vmatpush1.msra.mxu0 %v753
        %1034 = vmatprep.subr.mxu0 %v762
        %1035 = vmatpush1.msra.mxu0 %v761
        %1036 = vmatprep.subr.mxu0 %v770
        %1037 = vmatpush1.msra.mxu0 %v769
        %1038 = vmatprep.subr.mxu0 %v778
        %1039 = vmatpush1.msra.mxu0 %v777
        %1040 = vmatprep.subr.mxu0 %v786
        %1041 = vmatpush1.msra.mxu0 %v785
        %1042 = vmatprep.subr.mxu0 %v794
        %1043 = vmatpush1.msra.mxu0 %v793
        %1044 = vmatprep.mubr.f32.mxu0 %v538
        %1045 = vmatmul.mubr.f32.gmra.mrb[0].mxu0 %v536
        %v1046 = vpop.f32.mrb[0].mxu0
        %v1047 = vadd.f32 %v817, %v1046
        %v1048 = vpop.f32.mrb[0].mxu0
        %v1049 = vadd.f32 %v821, %v1048
        %1050 = vdwg.mxu0
        %1051 = vmatprep.subr.mxu0 %v548
        %1052 = vmatpush1.msra.mxu0 %v547
        %1053 = vmatprep.subr.mxu0 %v556
        %1054 = vmatpush1.msra.mxu0 %v555
        %1055 = vmatprep.subr.mxu0 %v564
        %1056 = vmatpush1.msra.mxu0 %v563
        %1057 = vmatprep.subr.mxu0 %v572
        %1058 = vmatpush1.msra.mxu0 %v571
        %1059 = vmatprep.subr.mxu0 %v580
        %1060 = vmatpush1.msra.mxu0 %v579
        %1061 = vmatprep.subr.mxu0 %v588
        %1062 = vmatpush1.msra.mxu0 %v587
        %1063 = vmatprep.subr.mxu0 %v596
        %1064 = vmatpush1.msra.mxu0 %v595
        %1065 = vmatprep.subr.mxu0 %v604
        %1066 = vmatpush1.msra.mxu0 %v603
        %1067 = vmatprep.subr.mxu0 %v612
        %1068 = vmatpush1.msra.mxu0 %v611
        %1069 = vmatprep.subr.mxu0 %v620
        %1070 = vmatpush1.msra.mxu0 %v619
        %1071 = vmatprep.subr.mxu0 %v628
        %1072 = vmatpush1.msra.mxu0 %v627
        %1073 = vmatprep.subr.mxu0 %v636
        %1074 = vmatpush1.msra.mxu0 %v635
        %1075 = vmatprep.subr.mxu0 %v644
        %1076 = vmatpush1.msra.mxu0 %v643
        %1077 = vmatprep.subr.mxu0 %v652
        %1078 = vmatpush1.msra.mxu0 %v651
        %1079 = vmatprep.subr.mxu0 %v660
        %1080 = vmatpush1.msra.mxu0 %v659
        %1081 = vmatprep.subr.mxu0 %v668
        %1082 = vmatpush1.msra.mxu0 %v667
        %1083 = vmatprep.subr.mxu0 %v676
        %1084 = vmatpush1.msra.mxu0 %v675
        %1085 = vmatprep.subr.mxu0 %v684
        %1086 = vmatpush1.msra.mxu0 %v683
        %1087 = vmatprep.subr.mxu0 %v692
        %1088 = vmatpush1.msra.mxu0 %v691
        %1089 = vmatprep.subr.mxu0 %v700
        %1090 = vmatpush1.msra.mxu0 %v699
        %1091 = vmatprep.subr.mxu0 %v708
        %1092 = vmatpush1.msra.mxu0 %v707
        %1093 = vmatprep.subr.mxu0 %v716
        %1094 = vmatpush1.msra.mxu0 %v715
        %1095 = vmatprep.subr.mxu0 %v724
        %1096 = vmatpush1.msra.mxu0 %v723
        %1097 = vmatprep.subr.mxu0 %v732
        %1098 = vmatpush1.msra.mxu0 %v731
        %1099 = vmatprep.subr.mxu0 %v740
        %1100 = vmatpush1.msra.mxu0 %v739
        %1101 = vmatprep.subr.mxu0 %v748
        %1102 = vmatpush1.msra.mxu0 %v747
        %1103 = vmatprep.subr.mxu0 %v756
        %1104 = vmatpush1.msra.mxu0 %v755
        %1105 = vmatprep.subr.mxu0 %v764
        %1106 = vmatpush1.msra.mxu0 %v763
        %1107 = vmatprep.subr.mxu0 %v772
        %1108 = vmatpush1.msra.mxu0 %v771
        %1109 = vmatprep.subr.mxu0 %v780
        %1110 = vmatpush1.msra.mxu0 %v779
        %1111 = vmatprep.subr.mxu0 %v788
        %1112 = vmatpush1.msra.mxu0 %v787
        %1113 = vmatprep.subr.mxu0 %v796
        %1114 = vmatpush1.msra.mxu0 %v795
        %1115 = vmatprep.mubr.f32.mxu0 %v538
        %1116 = vmatmul.mubr.f32.gmra.mrb[0].mxu0 %v536
        %v1117 = vpop.f32.mrb[0].mxu0
        %v1118 = vadd.f32 %v825, %v1117
        %v1119 = vpop.f32.mrb[0].mxu0
        %v1120 = vadd.f32 %v829, %v1119
        %1121 = vdwg.mxu0
        %1122 = vst [vmem:[#allocation2] sm:$0xff] %v801
        %1123 = vst [vmem:[#allocation2 + $0x8] sm:$0xff] %v805
        %1124 = vst [vmem:[#allocation2 + $0x10] sm:$0xff] %v809
        %1125 = vst [vmem:[#allocation2 + $0x18] sm:$0xff] %v813
        %1126 = vst [vmem:[#allocation2 + $0x20] sm:$0xff] %v817
        %1127 = vst [vmem:[#allocation2 + $0x28] sm:$0xff] %v821
        %1128 = vst [vmem:[#allocation2 + $0x30] sm:$0xff] %v825
        %1129 = vst [vmem:[#allocation2 + $0x38] sm:$0xff] %v829
        %1130 = vst [vmem:[#allocation2 + $0x40] sm:$0xff] %v905
        %1131 = vst [vmem:[#allocation2 + $0x48] sm:$0xff] %v907
        %1132 = vst [vmem:[#allocation2 + $0x50] sm:$0xff] %v976
        %1133 = vst [vmem:[#allocation2 + $0x58] sm:$0xff] %v978
        %1134 = vst [vmem:[#allocation2 + $0x60] sm:$0xff] %v1047
        %1135 = vst [vmem:[#allocation2 + $0x68] sm:$0xff] %v1049
        %1136 = vst [vmem:[#allocation2 + $0x70] sm:$0xff] %v1118
        %1137 = vst [vmem:[#allocation2 + $0x78] sm:$0xff] %v1120
        %v1138 = vld [vmem:[#allocation9] sm:$0xff]
        %v1139 = vld [vmem:[#allocation9 + $0x8] sm:$0xff]
        %v1140 = vld [vmem:[#allocation9 + $0x10] sm:$0xff]
        %v1141 = vld [vmem:[#allocation9 + $0x18] sm:$0xff]
        %v1142 = vld [vmem:[#allocation9 + $0x20] sm:$0xff]
        %v1143 = vld [vmem:[#allocation9 + $0x28] sm:$0xff]
        %v1144 = vld [vmem:[#allocation9 + $0x30] sm:$0xff]
        %v1145 = vld [vmem:[#allocation9 + $0x38] sm:$0xff]
        %v1146 = vld [vmem:[#allocation9 + $0x40] sm:$0xff]
        %v1147 = vld [vmem:[#allocation9 + $0x48] sm:$0xff]
        %v1148 = vld [vmem:[#allocation9 + $0x50] sm:$0xff]
        %v1149 = vld [vmem:[#allocation9 + $0x58] sm:$0xff]
        %v1150 = vld [vmem:[#allocation9 + $0x60] sm:$0xff]
        %v1151 = vld [vmem:[#allocation9 + $0x68] sm:$0xff]
        %v1152 = vld [vmem:[#allocation9 + $0x70] sm:$0xff]
        %v1153 = vld [vmem:[#allocation9 + $0x78] sm:$0xff]
        %v1154 = vld [vmem:[#allocation9 + $0x80] sm:$0xff]
        %v1155 = vld [vmem:[#allocation9 + $0x88] sm:$0xff]
        %v1156 = vld [vmem:[#allocation9 + $0x90] sm:$0xff]
        %v1157 = vld [vmem:[#allocation9 + $0x98] sm:$0xff]
        %v1158 = vld [vmem:[#allocation9 + $0xa0] sm:$0xff]
        %v1159 = vld [vmem:[#allocation9 + $0xa8] sm:$0xff]
        %v1160 = vld [vmem:[#allocation9 + $0xb0] sm:$0xff]
        %v1161 = vld [vmem:[#allocation9 + $0xb8] sm:$0xff]
        %v1162 = vld [vmem:[#allocation9 + $0xc0] sm:$0xff]
        %v1163 = vld [vmem:[#allocation9 + $0xc8] sm:$0xff]
        %v1164 = vld [vmem:[#allocation9 + $0xd0] sm:$0xff]
        %v1165 = vld [vmem:[#allocation9 + $0xd8] sm:$0xff]
        %v1166 = vld [vmem:[#allocation9 + $0xe0] sm:$0xff]
        %v1167 = vld [vmem:[#allocation9 + $0xe8] sm:$0xff]
        %v1168 = vld [vmem:[#allocation9 + $0xf0] sm:$0xff]
        %v1169 = vld [vmem:[#allocation9 + $0xf8] sm:$0xff]
        %v1170 = vld [vmem:[#allocation9 + $0x100] sm:$0xff]
        %v1171 = vld [vmem:[#allocation9 + $0x108] sm:$0xff]
        %v1172 = vld [vmem:[#allocation9 + $0x110] sm:$0xff]
        %v1173 = vld [vmem:[#allocation9 + $0x118] sm:$0xff]
        %v1174 = vld [vmem:[#allocation9 + $0x120] sm:$0xff]
        %v1175 = vld [vmem:[#allocation9 + $0x128] sm:$0xff]
        %v1176 = vld [vmem:[#allocation9 + $0x130] sm:$0xff]
        %v1177 = vld [vmem:[#allocation9 + $0x138] sm:$0xff]
        %v1178 = vld [vmem:[#allocation9 + $0x140] sm:$0xff]
        %v1179 = vld [vmem:[#allocation9 + $0x148] sm:$0xff]
        %v1180 = vld [vmem:[#allocation9 + $0x150] sm:$0xff]
        %v1181 = vld [vmem:[#allocation9 + $0x158] sm:$0xff]
        %v1182 = vld [vmem:[#allocation9 + $0x160] sm:$0xff]
        %v1183 = vld [vmem:[#allocation9 + $0x168] sm:$0xff]
        %v1184 = vld [vmem:[#allocation9 + $0x170] sm:$0xff]
        %v1185 = vld [vmem:[#allocation9 + $0x178] sm:$0xff]
        %v1186 = vld [vmem:[#allocation9 + $0x180] sm:$0xff]
        %v1187 = vld [vmem:[#allocation9 + $0x188] sm:$0xff]
        %v1188 = vld [vmem:[#allocation9 + $0x190] sm:$0xff]
        %v1189 = vld [vmem:[#allocation9 + $0x198] sm:$0xff]
        %v1190 = vld [vmem:[#allocation9 + $0x1a0] sm:$0xff]
        %v1191 = vld [vmem:[#allocation9 + $0x1a8] sm:$0xff]
        %v1192 = vld [vmem:[#allocation9 + $0x1b0] sm:$0xff]
        %v1193 = vld [vmem:[#allocation9 + $0x1b8] sm:$0xff]
        %v1194 = vld [vmem:[#allocation9 + $0x1c0] sm:$0xff]
        %v1195 = vld [vmem:[#allocation9 + $0x1c8] sm:$0xff]
        %v1196 = vld [vmem:[#allocation9 + $0x1d0] sm:$0xff]
        %v1197 = vld [vmem:[#allocation9 + $0x1d8] sm:$0xff]
        %v1198 = vld [vmem:[#allocation9 + $0x1e0] sm:$0xff]
        %v1199 = vld [vmem:[#allocation9 + $0x1e8] sm:$0xff]
        %v1200 = vld [vmem:[#allocation9 + $0x1f0] sm:$0xff]
        %v1201 = vld [vmem:[#allocation9 + $0x1f8] sm:$0xff]
        %v1202 = vld [vmem:[#allocation9 + $0x200] sm:$0xff]
        %v1203 = vld [vmem:[#allocation9 + $0x208] sm:$0xff]
        %v1204 = vld [vmem:[#allocation9 + $0x210] sm:$0xff]
        %v1205 = vld [vmem:[#allocation9 + $0x218] sm:$0xff]
        %v1206 = vld [vmem:[#allocation9 + $0x220] sm:$0xff]
        %v1207 = vld [vmem:[#allocation9 + $0x228] sm:$0xff]
        %v1208 = vld [vmem:[#allocation9 + $0x230] sm:$0xff]
        %v1209 = vld [vmem:[#allocation9 + $0x238] sm:$0xff]
        %v1210 = vld [vmem:[#allocation9 + $0x240] sm:$0xff]
        %v1211 = vld [vmem:[#allocation9 + $0x248] sm:$0xff]
        %v1212 = vld [vmem:[#allocation9 + $0x250] sm:$0xff]
        %v1213 = vld [vmem:[#allocation9 + $0x258] sm:$0xff]
        %v1214 = vld [vmem:[#allocation9 + $0x260] sm:$0xff]
        %v1215 = vld [vmem:[#allocation9 + $0x268] sm:$0xff]
        %v1216 = vld [vmem:[#allocation9 + $0x270] sm:$0xff]
        %v1217 = vld [vmem:[#allocation9 + $0x278] sm:$0xff]
        %v1218 = vld [vmem:[#allocation9 + $0x280] sm:$0xff]
        %v1219 = vld [vmem:[#allocation9 + $0x288] sm:$0xff]
        %v1220 = vld [vmem:[#allocation9 + $0x290] sm:$0xff]
        %v1221 = vld [vmem:[#allocation9 + $0x298] sm:$0xff]
        %v1222 = vld [vmem:[#allocation9 + $0x2a0] sm:$0xff]
        %v1223 = vld [vmem:[#allocation9 + $0x2a8] sm:$0xff]
        %v1224 = vld [vmem:[#allocation9 + $0x2b0] sm:$0xff]
        %v1225 = vld [vmem:[#allocation9 + $0x2b8] sm:$0xff]
        %v1226 = vld [vmem:[#allocation9 + $0x2c0] sm:$0xff]
        %v1227 = vld [vmem:[#allocation9 + $0x2c8] sm:$0xff]
        %v1228 = vld [vmem:[#allocation9 + $0x2d0] sm:$0xff]
        %v1229 = vld [vmem:[#allocation9 + $0x2d8] sm:$0xff]
        %v1230 = vld [vmem:[#allocation9 + $0x2e0] sm:$0xff]
        %v1231 = vld [vmem:[#allocation9 + $0x2e8] sm:$0xff]
        %v1232 = vld [vmem:[#allocation9 + $0x2f0] sm:$0xff]
        %v1233 = vld [vmem:[#allocation9 + $0x2f8] sm:$0xff]
        %v1234 = vld [vmem:[#allocation9 + $0x300] sm:$0xff]
        %v1235 = vld [vmem:[#allocation9 + $0x308] sm:$0xff]
        %v1236 = vld [vmem:[#allocation9 + $0x310] sm:$0xff]
        %v1237 = vld [vmem:[#allocation9 + $0x318] sm:$0xff]
        %v1238 = vld [vmem:[#allocation9 + $0x320] sm:$0xff]
        %v1239 = vld [vmem:[#allocation9 + $0x328] sm:$0xff]
        %v1240 = vld [vmem:[#allocation9 + $0x330] sm:$0xff]
        %v1241 = vld [vmem:[#allocation9 + $0x338] sm:$0xff]
        %v1242 = vld [vmem:[#allocation9 + $0x340] sm:$0xff]
        %v1243 = vld [vmem:[#allocation9 + $0x348] sm:$0xff]
        %v1244 = vld [vmem:[#allocation9 + $0x350] sm:$0xff]
        %v1245 = vld [vmem:[#allocation9 + $0x358] sm:$0xff]
        %v1246 = vld [vmem:[#allocation9 + $0x360] sm:$0xff]
        %v1247 = vld [vmem:[#allocation9 + $0x368] sm:$0xff]
        %v1248 = vld [vmem:[#allocation9 + $0x370] sm:$0xff]
        %v1249 = vld [vmem:[#allocation9 + $0x378] sm:$0xff]
        %v1250 = vld [vmem:[#allocation9 + $0x380] sm:$0xff]
        %v1251 = vld [vmem:[#allocation9 + $0x388] sm:$0xff]
        %v1252 = vld [vmem:[#allocation9 + $0x390] sm:$0xff]
        %v1253 = vld [vmem:[#allocation9 + $0x398] sm:$0xff]
        %v1254 = vld [vmem:[#allocation9 + $0x3a0] sm:$0xff]
        %v1255 = vld [vmem:[#allocation9 + $0x3a8] sm:$0xff]
        %v1256 = vld [vmem:[#allocation9 + $0x3b0] sm:$0xff]
        %v1257 = vld [vmem:[#allocation9 + $0x3b8] sm:$0xff]
        %v1258 = vld [vmem:[#allocation9 + $0x3c0] sm:$0xff]
        %v1259 = vld [vmem:[#allocation9 + $0x3c8] sm:$0xff]
        %v1260 = vld [vmem:[#allocation9 + $0x3d0] sm:$0xff]
        %v1261 = vld [vmem:[#allocation9 + $0x3d8] sm:$0xff]
        %v1262 = vld [vmem:[#allocation9 + $0x3e0] sm:$0xff]
        %v1263 = vld [vmem:[#allocation9 + $0x3e8] sm:$0xff]
        %v1264 = vld [vmem:[#allocation9 + $0x3f0] sm:$0xff]
        %v1265 = vld [vmem:[#allocation9 + $0x3f8] sm:$0xff]
        %v1266 = vld [vmem:[#allocation9 + $0x400] sm:$0xff]
        %v1267 = vld [vmem:[#allocation9 + $0x408] sm:$0xff]
        %v1268 = vld [vmem:[#allocation9 + $0x410] sm:$0xff]
        %v1269 = vld [vmem:[#allocation9 + $0x418] sm:$0xff]
        %v1270 = vld [vmem:[#allocation9 + $0x420] sm:$0xff]
        %v1271 = vld [vmem:[#allocation9 + $0x428] sm:$0xff]
        %v1272 = vld [vmem:[#allocation9 + $0x430] sm:$0xff]
        %v1273 = vld [vmem:[#allocation9 + $0x438] sm:$0xff]
        %v1274 = vld [vmem:[#allocation9 + $0x440] sm:$0xff]
        %v1275 = vld [vmem:[#allocation9 + $0x448] sm:$0xff]
        %v1276 = vld [vmem:[#allocation9 + $0x450] sm:$0xff]
        %v1277 = vld [vmem:[#allocation9 + $0x458] sm:$0xff]
        %v1278 = vld [vmem:[#allocation9 + $0x460] sm:$0xff]
        %v1279 = vld [vmem:[#allocation9 + $0x468] sm:$0xff]
        %v1280 = vld [vmem:[#allocation9 + $0x470] sm:$0xff]
        %v1281 = vld [vmem:[#allocation9 + $0x478] sm:$0xff]
        %v1282 = vld [vmem:[#allocation9 + $0x480] sm:$0xff]
        %v1283 = vld [vmem:[#allocation9 + $0x488] sm:$0xff]
        %v1284 = vld [vmem:[#allocation9 + $0x490] sm:$0xff]
        %v1285 = vld [vmem:[#allocation9 + $0x498] sm:$0xff]
        %v1286 = vld [vmem:[#allocation9 + $0x4a0] sm:$0xff]
        %v1287 = vld [vmem:[#allocation9 + $0x4a8] sm:$0xff]
        %v1288 = vld [vmem:[#allocation9 + $0x4b0] sm:$0xff]
        %v1289 = vld [vmem:[#allocation9 + $0x4b8] sm:$0xff]
        %v1290 = vld [vmem:[#allocation9 + $0x4c0] sm:$0xff]
        %v1291 = vld [vmem:[#allocation9 + $0x4c8] sm:$0xff]
        %v1292 = vld [vmem:[#allocation9 + $0x4d0] sm:$0xff]
        %v1293 = vld [vmem:[#allocation9 + $0x4d8] sm:$0xff]
        %v1294 = vld [vmem:[#allocation9 + $0x4e0] sm:$0xff]
        %v1295 = vld [vmem:[#allocation9 + $0x4e8] sm:$0xff]
        %v1296 = vld [vmem:[#allocation9 + $0x4f0] sm:$0xff]
        %v1297 = vld [vmem:[#allocation9 + $0x4f8] sm:$0xff]
        %v1298 = vld [vmem:[#allocation9 + $0x500] sm:$0xff]
        %v1299 = vld [vmem:[#allocation9 + $0x508] sm:$0xff]
        %v1300 = vld [vmem:[#allocation9 + $0x510] sm:$0xff]
        %v1301 = vld [vmem:[#allocation9 + $0x518] sm:$0xff]
        %v1302 = vld [vmem:[#allocation9 + $0x520] sm:$0xff]
        %v1303 = vld [vmem:[#allocation9 + $0x528] sm:$0xff]
        %v1304 = vld [vmem:[#allocation9 + $0x530] sm:$0xff]
        %v1305 = vld [vmem:[#allocation9 + $0x538] sm:$0xff]
        %v1306 = vld [vmem:[#allocation9 + $0x540] sm:$0xff]
        %v1307 = vld [vmem:[#allocation9 + $0x548] sm:$0xff]
        %v1308 = vld [vmem:[#allocation9 + $0x550] sm:$0xff]
        %v1309 = vld [vmem:[#allocation9 + $0x558] sm:$0xff]
        %v1310 = vld [vmem:[#allocation9 + $0x560] sm:$0xff]
        %v1311 = vld [vmem:[#allocation9 + $0x568] sm:$0xff]
        %v1312 = vld [vmem:[#allocation9 + $0x570] sm:$0xff]
        %v1313 = vld [vmem:[#allocation9 + $0x578] sm:$0xff]
        %v1314 = vld [vmem:[#allocation9 + $0x580] sm:$0xff]
        %v1315 = vld [vmem:[#allocation9 + $0x588] sm:$0xff]
        %v1316 = vld [vmem:[#allocation9 + $0x590] sm:$0xff]
        %v1317 = vld [vmem:[#allocation9 + $0x598] sm:$0xff]
        %v1318 = vld [vmem:[#allocation9 + $0x5a0] sm:$0xff]
        %v1319 = vld [vmem:[#allocation9 + $0x5a8] sm:$0xff]
        %v1320 = vld [vmem:[#allocation9 + $0x5b0] sm:$0xff]
        %v1321 = vld [vmem:[#allocation9 + $0x5b8] sm:$0xff]
        %v1322 = vld [vmem:[#allocation9 + $0x5c0] sm:$0xff]
        %v1323 = vld [vmem:[#allocation9 + $0x5c8] sm:$0xff]
        %v1324 = vld [vmem:[#allocation9 + $0x5d0] sm:$0xff]
        %v1325 = vld [vmem:[#allocation9 + $0x5d8] sm:$0xff]
        %v1326 = vld [vmem:[#allocation9 + $0x5e0] sm:$0xff]
        %v1327 = vld [vmem:[#allocation9 + $0x5e8] sm:$0xff]
        %v1328 = vld [vmem:[#allocation9 + $0x5f0] sm:$0xff]
        %v1329 = vld [vmem:[#allocation9 + $0x5f8] sm:$0xff]
        %v1330 = vld [vmem:[#allocation9 + $0x600] sm:$0xff]
        %v1331 = vld [vmem:[#allocation9 + $0x608] sm:$0xff]
        %v1332 = vld [vmem:[#allocation9 + $0x610] sm:$0xff]
        %v1333 = vld [vmem:[#allocation9 + $0x618] sm:$0xff]
        %v1334 = vld [vmem:[#allocation9 + $0x620] sm:$0xff]
        %v1335 = vld [vmem:[#allocation9 + $0x628] sm:$0xff]
        %v1336 = vld [vmem:[#allocation9 + $0x630] sm:$0xff]
        %v1337 = vld [vmem:[#allocation9 + $0x638] sm:$0xff]
        %v1338 = vld [vmem:[#allocation9 + $0x640] sm:$0xff]
        %v1339 = vld [vmem:[#allocation9 + $0x648] sm:$0xff]
        %v1340 = vld [vmem:[#allocation9 + $0x650] sm:$0xff]
        %v1341 = vld [vmem:[#allocation9 + $0x658] sm:$0xff]
        %v1342 = vld [vmem:[#allocation9 + $0x660] sm:$0xff]
        %v1343 = vld [vmem:[#allocation9 + $0x668] sm:$0xff]
        %v1344 = vld [vmem:[#allocation9 + $0x670] sm:$0xff]
        %v1345 = vld [vmem:[#allocation9 + $0x678] sm:$0xff]
        %v1346 = vld [vmem:[#allocation9 + $0x680] sm:$0xff]
        %v1347 = vld [vmem:[#allocation9 + $0x688] sm:$0xff]
        %v1348 = vld [vmem:[#allocation9 + $0x690] sm:$0xff]
        %v1349 = vld [vmem:[#allocation9 + $0x698] sm:$0xff]
        %v1350 = vld [vmem:[#allocation9 + $0x6a0] sm:$0xff]
        %v1351 = vld [vmem:[#allocation9 + $0x6a8] sm:$0xff]
        %v1352 = vld [vmem:[#allocation9 + $0x6b0] sm:$0xff]
        %v1353 = vld [vmem:[#allocation9 + $0x6b8] sm:$0xff]
        %v1354 = vld [vmem:[#allocation9 + $0x6c0] sm:$0xff]
        %v1355 = vld [vmem:[#allocation9 + $0x6c8] sm:$0xff]
        %v1356 = vld [vmem:[#allocation9 + $0x6d0] sm:$0xff]
        %v1357 = vld [vmem:[#allocation9 + $0x6d8] sm:$0xff]
        %v1358 = vld [vmem:[#allocation9 + $0x6e0] sm:$0xff]
        %v1359 = vld [vmem:[#allocation9 + $0x6e8] sm:$0xff]
        %v1360 = vld [vmem:[#allocation9 + $0x6f0] sm:$0xff]
        %v1361 = vld [vmem:[#allocation9 + $0x6f8] sm:$0xff]
        %v1362 = vld [vmem:[#allocation9 + $0x700] sm:$0xff]
        %v1363 = vld [vmem:[#allocation9 + $0x708] sm:$0xff]
        %v1364 = vld [vmem:[#allocation9 + $0x710] sm:$0xff]
        %v1365 = vld [vmem:[#allocation9 + $0x718] sm:$0xff]
        %v1366 = vld [vmem:[#allocation9 + $0x720] sm:$0xff]
        %v1367 = vld [vmem:[#allocation9 + $0x728] sm:$0xff]
        %v1368 = vld [vmem:[#allocation9 + $0x730] sm:$0xff]
        %v1369 = vld [vmem:[#allocation9 + $0x738] sm:$0xff]
        %v1370 = vld [vmem:[#allocation9 + $0x740] sm:$0xff]
        %v1371 = vld [vmem:[#allocation9 + $0x748] sm:$0xff]
        %v1372 = vld [vmem:[#allocation9 + $0x750] sm:$0xff]
        %v1373 = vld [vmem:[#allocation9 + $0x758] sm:$0xff]
        %v1374 = vld [vmem:[#allocation9 + $0x760] sm:$0xff]
        %v1375 = vld [vmem:[#allocation9 + $0x768] sm:$0xff]
        %v1376 = vld [vmem:[#allocation9 + $0x770] sm:$0xff]
        %v1377 = vld [vmem:[#allocation9 + $0x778] sm:$0xff]
        %v1378 = vld [vmem:[#allocation9 + $0x780] sm:$0xff]
        %v1379 = vld [vmem:[#allocation9 + $0x788] sm:$0xff]
        %v1380 = vld [vmem:[#allocation9 + $0x790] sm:$0xff]
        %v1381 = vld [vmem:[#allocation9 + $0x798] sm:$0xff]
        %v1382 = vld [vmem:[#allocation9 + $0x7a0] sm:$0xff]
        %v1383 = vld [vmem:[#allocation9 + $0x7a8] sm:$0xff]
        %v1384 = vld [vmem:[#allocation9 + $0x7b0] sm:$0xff]
        %v1385 = vld [vmem:[#allocation9 + $0x7b8] sm:$0xff]
        %v1386 = vld [vmem:[#allocation9 + $0x7c0] sm:$0xff]
        %v1387 = vld [vmem:[#allocation9 + $0x7c8] sm:$0xff]
        %v1388 = vld [vmem:[#allocation9 + $0x7d0] sm:$0xff]
        %v1389 = vld [vmem:[#allocation9 + $0x7d8] sm:$0xff]
        %v1390 = vld [vmem:[#allocation9 + $0x7e0] sm:$0xff]
        %v1391 = vld [vmem:[#allocation9 + $0x7e8] sm:$0xff]
        %v1392 = vld [vmem:[#allocation9 + $0x7f0] sm:$0xff]
        %v1393 = vld [vmem:[#allocation9 + $0x7f8] sm:$0xff]
        %v1394 = vld [vmem:[#allocation2] sm:$0xc0]
        %v1395 = vld [vmem:[#allocation2 + $0x8] sm:$0xc0]
        %v1396 = vld [vmem:[#allocation2 + $0x10] sm:$0xc0]
        %v1397 = vld [vmem:[#allocation2 + $0x18] sm:$0xc0]
        %v1398 = vld [vmem:[#allocation2 + $0x20] sm:$0xc0]
        %v1399 = vld [vmem:[#allocation2 + $0x28] sm:$0xc0]
        %v1400 = vld [vmem:[#allocation2 + $0x30] sm:$0xc0]
        %v1401 = vld [vmem:[#allocation2 + $0x38] sm:$0xc0]
        %v1402 = vld [vmem:[#allocation2 + $0x40] sm:$0x3f]
        %v1403 = vld [vmem:[#allocation2 + $0x48] sm:$0x3f]
        %v1404 = vld [vmem:[#allocation2 + $0x50] sm:$0x3f]
        %v1405 = vld [vmem:[#allocation2 + $0x58] sm:$0x3f]
        %v1406 = vld [vmem:[#allocation2 + $0x60] sm:$0x3f]
        %v1407 = vld [vmem:[#allocation2 + $0x68] sm:$0x3f]
        %v1408 = vld [vmem:[#allocation2 + $0x70] sm:$0x3f]
        %v1409 = vld [vmem:[#allocation2 + $0x78] sm:$0x3f]
        %v1410 = vmul.f32 %v1394, 0.5
        %v1411 = vmul.f32 %v1395, 0.5
        %v1412 = vmul.f32 %v1402, 0.5
        %v1413 = vmul.f32 %v1403, 0.5
        %v1414 = vtanh.pop %v1410
        %v1415 = vtanh.pop %v1411
        %v1416 = vtanh.pop %v1412
        %v1417 = vtanh.pop %v1413
        %v1418 = vadd.f32 %v1414, 1.0
        %v1419 = vadd.f32 %v1415, 1.0
        %v1420 = vadd.f32 %v1416, 1.0
        %v1421 = vadd.f32 %v1417, 1.0
        %v1422 = vmul.f32 %v1418, 0.5
        %v1423 = vmul.f32 %v1419, 0.5
        %v1424 = vmul.f32 %v1420, 0.5
        %v1425 = vmul.f32 %v1421, 0.5
        %v1426 = vmul.f32 %v1396, 0.5
        %v1427 = vmul.f32 %v1397, 0.5
        %v1428 = vmul.f32 %v1404, 0.5
        %v1429 = vmul.f32 %v1405, 0.5
        %v1430 = vtanh.pop %v1426
        %v1431 = vtanh.pop %v1427
        %v1432 = vtanh.pop %v1428
        %v1433 = vtanh.pop %v1429
        %v1434 = vadd.f32 %v1430, 1.0
        %v1435 = vadd.f32 %v1431, 1.0
        %v1436 = vadd.f32 %v1432, 1.0
        %v1437 = vadd.f32 %v1433, 1.0
        %v1438 = vmul.f32 %v1434, 0.5
        %v1439 = vmul.f32 %v1435, 0.5
        %v1440 = vmul.f32 %v1436, 0.5
        %v1441 = vmul.f32 %v1437, 0.5
        %v1442 = vtanh.pop %v1398
        %v1443 = vtanh.pop %v1399
        %v1444 = vtanh.pop %v1406
        %v1445 = vtanh.pop %v1407
        %v1446 = vmul.f32 %v1400, 0.5
        %v1447 = vmul.f32 %v1401, 0.5
        %v1448 = vmul.f32 %v1408, 0.5
        %v1449 = vmul.f32 %v1409, 0.5
        %v1450 = vtanh.pop %v1446
        %v1451 = vtanh.pop %v1447
        %v1452 = vtanh.pop %v1448
        %v1453 = vtanh.pop %v1449
        %v1454 = vadd.f32 %v1450, 1.0
        %v1455 = vadd.f32 %v1451, 1.0
        %v1456 = vadd.f32 %v1452, 1.0
        %v1457 = vadd.f32 %v1453, 1.0
        %v1458 = vmul.f32 %v1454, 0.5
        %v1459 = vmul.f32 %v1455, 0.5
        %v1460 = vmul.f32 %v1456, 0.5
        %v1461 = vmul.f32 %v1457, 0.5
        %v1462 = vmul.f32 %v1438, 0.0
        %v1463 = vmul.f32 %v1439, 0.0
        %v1464 = vmul.f32 %v1440, 0.0
        %v1465 = vmul.f32 %v1441, 0.0
        %v1466 = vmul.f32 %v1422, %v1442
        %v1467 = vmul.f32 %v1423, %v1443
        %v1468 = vmul.f32 %v1424, %v1444
        %v1469 = vmul.f32 %v1425, %v1445
        %v1470 = vadd.f32 %v1462, %v1466
        %v1471 = vadd.f32 %v1463, %v1467
        %v1472 = vadd.f32 %v1464, %v1468
        %v1473 = vadd.f32 %v1465, %v1469
        %v1474 = vtanh.pop %v1470
        %v1475 = vtanh.pop %v1471
        %v1476 = vtanh.pop %v1472
        %v1477 = vtanh.pop %v1473
        %v1478 = vmul.f32 %v1458, %v1474
        %v1479 = vmul.f32 %v1459, %v1475
        %v1480 = vmul.f32 %v1460, %v1476
        %v1481 = vmul.f32 %v1461, %v1477
        %v1482 = vld [vmem:[#allocation2] sm:$0x80]
        %v1483 = vld [vmem:[#allocation2 + $0x8] sm:$0x80]
        %v1484 = vld [vmem:[#allocation2 + $0x10] sm:$0x80]
        %v1485 = vld [vmem:[#allocation2 + $0x18] sm:$0x80]
        %v1486 = vld [vmem:[#allocation2 + $0x20] sm:$0x80]
        %v1487 = vld [vmem:[#allocation2 + $0x28] sm:$0x80]
        %v1488 = vld [vmem:[#allocation2 + $0x30] sm:$0x80]
        %v1489 = vld [vmem:[#allocation2 + $0x38] sm:$0x80]
        %v1490 = vld [vmem:[#allocation2 + $0x40] sm:$0x7f]
        %v1491 = vld [vmem:[#allocation2 + $0x48] sm:$0x7f]
        %v1492 = vld [vmem:[#allocation2 + $0x50] sm:$0x7f]
        %v1493 = vld [vmem:[#allocation2 + $0x58] sm:$0x7f]
        %v1494 = vld [vmem:[#allocation2 + $0x60] sm:$0x7f]
        %v1495 = vld [vmem:[#allocation2 + $0x68] sm:$0x7f]
        %v1496 = vld [vmem:[#allocation2 + $0x70] sm:$0x7f]
        %v1497 = vld [vmem:[#allocation2 + $0x78] sm:$0x7f]
        %vm1502 = vcmask 1041408
        %v1503 = vrot.slane %v1478, 6
        %v1504 = vrot.slane %v1480, 6
        %v1505 = vsel %vm1502, %v1503, %v1504
        %v1506 = vrot.slane %v1479, 6
        %v1507 = vrot.slane %v1481, 6
        %v1508 = vsel %vm1502, %v1506, %v1507
        %1511 = vmatprep.subr.mxu0 %v1139
        %1512 = vmatpush1.msra.mxu0 %v1138
        %1513 = vmatprep.subr.mxu0 %v1147
        %1514 = vmatpush1.msra.mxu0 %v1146
        %1515 = vmatprep.subr.mxu0 %v1155
        %1516 = vmatpush1.msra.mxu0 %v1154
        %1517 = vmatprep.subr.mxu0 %v1163
        %1518 = vmatpush1.msra.mxu0 %v1162
        %1519 = vmatprep.subr.mxu0 %v1171
        %1520 = vmatpush1.msra.mxu0 %v1170
        %1521 = vmatprep.subr.mxu0 %v1179
        %1522 = vmatpush1.msra.mxu0 %v1178
        %1523 = vmatprep.subr.mxu0 %v1187
        %1524 = vmatpush1.msra.mxu0 %v1186
        %1525 = vmatprep.subr.mxu0 %v1195
        %1526 = vmatpush1.msra.mxu0 %v1194
        %1527 = vmatprep.subr.mxu0 %v1203
        %1528 = vmatpush1.msra.mxu0 %v1202
        %1529 = vmatprep.subr.mxu0 %v1211
        %1530 = vmatpush1.msra.mxu0 %v1210
        %1531 = vmatprep.subr.mxu0 %v1219
        %1532 = vmatpush1.msra.mxu0 %v1218
        %1533 = vmatprep.subr.mxu0 %v1227
        %1534 = vmatpush1.msra.mxu0 %v1226
        %1535 = vmatprep.subr.mxu0 %v1235
        %1536 = vmatpush1.msra.mxu0 %v1234
        %1537 = vmatprep.subr.mxu0 %v1243
        %1538 = vmatpush1.msra.mxu0 %v1242
        %1539 = vmatprep.subr.mxu0 %v1251
        %1540 = vmatpush1.msra.mxu0 %v1250
        %1541 = vmatprep.subr.mxu0 %v1259
        %1542 = vmatpush1.msra.mxu0 %v1258
        %1543 = vmatprep.subr.mxu0 %v1267
        %1544 = vmatpush1.msra.mxu0 %v1266
        %1545 = vmatprep.subr.mxu0 %v1275
        %1546 = vmatpush1.msra.mxu0 %v1274
        %1547 = vmatprep.subr.mxu0 %v1283
        %1548 = vmatpush1.msra.mxu0 %v1282
        %1549 = vmatprep.subr.mxu0 %v1291
        %1550 = vmatpush1.msra.mxu0 %v1290
        %1551 = vmatprep.subr.mxu0 %v1299
        %1552 = vmatpush1.msra.mxu0 %v1298
        %1553 = vmatprep.subr.mxu0 %v1307
        %1554 = vmatpush1.msra.mxu0 %v1306
        %1555 = vmatprep.subr.mxu0 %v1315
        %1556 = vmatpush1.msra.mxu0 %v1314
        %1557 = vmatprep.subr.mxu0 %v1323
        %1558 = vmatpush1.msra.mxu0 %v1322
        %1559 = vmatprep.subr.mxu0 %v1331
        %1560 = vmatpush1.msra.mxu0 %v1330
        %1561 = vmatprep.subr.mxu0 %v1339
        %1562 = vmatpush1.msra.mxu0 %v1338
        %1563 = vmatprep.subr.mxu0 %v1347
        %1564 = vmatpush1.msra.mxu0 %v1346
        %1565 = vmatprep.subr.mxu0 %v1355
        %1566 = vmatpush1.msra.mxu0 %v1354
        %1567 = vmatprep.subr.mxu0 %v1363
        %1568 = vmatpush1.msra.mxu0 %v1362
        %1569 = vmatprep.subr.mxu0 %v1371
        %1570 = vmatpush1.msra.mxu0 %v1370
        %1571 = vmatprep.subr.mxu0 %v1379
        %1572 = vmatpush1.msra.mxu0 %v1378
        %1573 = vmatprep.subr.mxu0 %v1387
        %1574 = vmatpush1.msra.mxu0 %v1386
        %1575 = vmatprep.mubr.f32.mxu0 %v1508
        %1576 = vmatmul.mubr.f32.gmra.mrb[0].mxu0 %v1505
        %v1577 = vpop.f32.mrb[0].mxu0
        %v1578 = vadd.f32 0.0, %v1577
        %v1579 = vpop.f32.mrb[0].mxu0
        %v1580 = vadd.f32 0.0, %v1579
        %1581 = vdwg.mxu0
        %1582 = vmatprep.subr.mxu0 %v1141
        %1583 = vmatpush1.msra.mxu0 %v1140
        %1584 = vmatprep.subr.mxu0 %v1149
        %1585 = vmatpush1.msra.mxu0 %v1148
        %1586 = vmatprep.subr.mxu0 %v1157
        %1587 = vmatpush1.msra.mxu0 %v1156
        %1588 = vmatprep.subr.mxu0 %v1165
        %1589 = vmatpush1.msra.mxu0 %v1164
        %1590 = vmatprep.subr.mxu0 %v1173
        %1591 = vmatpush1.msra.mxu0 %v1172
        %1592 = vmatprep.subr.mxu0 %v1181
        %1593 = vmatpush1.msra.mxu0 %v1180
        %1594 = vmatprep.subr.mxu0 %v1189
        %1595 = vmatpush1.msra.mxu0 %v1188
        %1596 = vmatprep.subr.mxu0 %v1197
        %1597 = vmatpush1.msra.mxu0 %v1196
        %1598 = vmatprep.subr.mxu0 %v1205
        %1599 = vmatpush1.msra.mxu0 %v1204
        %1600 = vmatprep.subr.mxu0 %v1213
        %1601 = vmatpush1.msra.mxu0 %v1212
        %1602 = vmatprep.subr.mxu0 %v1221
        %1603 = vmatpush1.msra.mxu0 %v1220
        %1604 = vmatprep.subr.mxu0 %v1229
        %1605 = vmatpush1.msra.mxu0 %v1228
        %1606 = vmatprep.subr.mxu0 %v1237
        %1607 = vmatpush1.msra.mxu0 %v1236
        %1608 = vmatprep.subr.mxu0 %v1245
        %1609 = vmatpush1.msra.mxu0 %v1244
        %1610 = vmatprep.subr.mxu0 %v1253
        %1611 = vmatpush1.msra.mxu0 %v1252
        %1612 = vmatprep.subr.mxu0 %v1261
        %1613 = vmatpush1.msra.mxu0 %v1260
        %1614 = vmatprep.subr.mxu0 %v1269
        %1615 = vmatpush1.msra.mxu0 %v1268
        %1616 = vmatprep.subr.mxu0 %v1277
        %1617 = vmatpush1.msra.mxu0 %v1276
        %1618 = vmatprep.subr.mxu0 %v1285
        %1619 = vmatpush1.msra.mxu0 %v1284
        %1620 = vmatprep.subr.mxu0 %v1293
        %1621 = vmatpush1.msra.mxu0 %v1292
        %1622 = vmatprep.subr.mxu0 %v1301
        %1623 = vmatpush1.msra.mxu0 %v1300
        %1624 = vmatprep.subr.mxu0 %v1309
        %1625 = vmatpush1.msra.mxu0 %v1308
        %1626 = vmatprep.subr.mxu0 %v1317
        %1627 = vmatpush1.msra.mxu0 %v1316
        %1628 = vmatprep.subr.mxu0 %v1325
        %1629 = vmatpush1.msra.mxu0 %v1324
        %1630 = vmatprep.subr.mxu0 %v1333
        %1631 = vmatpush1.msra.mxu0 %v1332
        %1632 = vmatprep.subr.mxu0 %v1341
        %1633 = vmatpush1.msra.mxu0 %v1340
        %1634 = vmatprep.subr.mxu0 %v1349
        %1635 = vmatpush1.msra.mxu0 %v1348
        %1636 = vmatprep.subr.mxu0 %v1357
        %1637 = vmatpush1.msra.mxu0 %v1356
        %1638 = vmatprep.subr.mxu0 %v1365
        %1639 = vmatpush1.msra.mxu0 %v1364
        %1640 = vmatprep.subr.mxu0 %v1373
        %1641 = vmatpush1.msra.mxu0 %v1372
        %1642 = vmatprep.subr.mxu0 %v1381
        %1643 = vmatpush1.msra.mxu0 %v1380
        %1644 = vmatprep.subr.mxu0 %v1389
        %1645 = vmatpush1.msra.mxu0 %v1388
        %1646 = vmatprep.mubr.f32.mxu0 %v1508
        %1647 = vmatmul.mubr.f32.gmra.mrb[0].mxu0 %v1505
        %v1648 = vpop.f32.mrb[0].mxu0
        %v1649 = vadd.f32 0.0, %v1648
        %v1650 = vpop.f32.mrb[0].mxu0
        %v1651 = vadd.f32 0.0, %v1650
        %1652 = vdwg.mxu0
        %1653 = vmatprep.subr.mxu0 %v1143
        %1654 = vmatpush1.msra.mxu0 %v1142
        %1655 = vmatprep.subr.mxu0 %v1151
        %1656 = vmatpush1.msra.mxu0 %v1150
        %1657 = vmatprep.subr.mxu0 %v1159
        %1658 = vmatpush1.msra.mxu0 %v1158
        %1659 = vmatprep.subr.mxu0 %v1167
        %1660 = vmatpush1.msra.mxu0 %v1166
        %1661 = vmatprep.subr.mxu0 %v1175
        %1662 = vmatpush1.msra.mxu0 %v1174
        %1663 = vmatprep.subr.mxu0 %v1183
        %1664 = vmatpush1.msra.mxu0 %v1182
        %1665 = vmatprep.subr.mxu0 %v1191
        %1666 = vmatpush1.msra.mxu0 %v1190
        %1667 = vmatprep.subr.mxu0 %v1199
        %1668 = vmatpush1.msra.mxu0 %v1198
        %1669 = vmatprep.subr.mxu0 %v1207
        %1670 = vmatpush1.msra.mxu0 %v1206
        %1671 = vmatprep.subr.mxu0 %v1215
        %1672 = vmatpush1.msra.mxu0 %v1214
        %1673 = vmatprep.subr.mxu0 %v1223
        %1674 = vmatpush1.msra.mxu0 %v1222
        %1675 = vmatprep.subr.mxu0 %v1231
        %1676 = vmatpush1.msra.mxu0 %v1230
        %1677 = vmatprep.subr.mxu0 %v1239
        %1678 = vmatpush1.msra.mxu0 %v1238
        %1679 = vmatprep.subr.mxu0 %v1247
        %1680 = vmatpush1.msra.mxu0 %v1246
        %1681 = vmatprep.subr.mxu0 %v1255
        %1682 = vmatpush1.msra.mxu0 %v1254
        %1683 = vmatprep.subr.mxu0 %v1263
        %1684 = vmatpush1.msra.mxu0 %v1262
        %1685 = vmatprep.subr.mxu0 %v1271
        %1686 = vmatpush1.msra.mxu0 %v1270
        %1687 = vmatprep.subr.mxu0 %v1279
        %1688 = vmatpush1.msra.mxu0 %v1278
        %1689 = vmatprep.subr.mxu0 %v1287
        %1690 = vmatpush1.msra.mxu0 %v1286
        %1691 = vmatprep.subr.mxu0 %v1295
        %1692 = vmatpush1.msra.mxu0 %v1294
        %1693 = vmatprep.subr.mxu0 %v1303
        %1694 = vmatpush1.msra.mxu0 %v1302
        %1695 = vmatprep.subr.mxu0 %v1311
        %1696 = vmatpush1.msra.mxu0 %v1310
        %1697 = vmatprep.subr.mxu0 %v1319
        %1698 = vmatpush1.msra.mxu0 %v1318
        %1699 = vmatprep.subr.mxu0 %v1327
        %1700 = vmatpush1.msra.mxu0 %v1326
        %1701 = vmatprep.subr.mxu0 %v1335
        %1702 = vmatpush1.msra.mxu0 %v1334
        %1703 = vmatprep.subr.mxu0 %v1343
        %1704 = vmatpush1.msra.mxu0 %v1342
        %1705 = vmatprep.subr.mxu0 %v1351
        %1706 = vmatpush1.msra.mxu0 %v1350
        %1707 = vmatprep.subr.mxu0 %v1359
        %1708 = vmatpush1.msra.mxu0 %v1358
        %1709 = vmatprep.subr.mxu0 %v1367
        %1710 = vmatpush1.msra.mxu0 %v1366
        %1711 = vmatprep.subr.mxu0 %v1375
        %1712 = vmatpush1.msra.mxu0 %v1374
        %1713 = vmatprep.subr.mxu0 %v1383
        %1714 = vmatpush1.msra.mxu0 %v1382
        %1715 = vmatprep.subr.mxu0 %v1391
        %1716 = vmatpush1.msra.mxu0 %v1390
        %1717 = vmatprep.mubr.f32.mxu0 %v1508
        %1718 = vmatmul.mubr.f32.gmra.mrb[0].mxu0 %v1505
        %v1719 = vpop.f32.mrb[0].mxu0
        %v1720 = vadd.f32 0.0, %v1719
        %v1721 = vpop.f32.mrb[0].mxu0
        %v1722 = vadd.f32 0.0, %v1721
        %1723 = vdwg.mxu0
        %1724 = vmatprep.subr.mxu0 %v1145
        %1725 = vmatpush1.msra.mxu0 %v1144
        %1726 = vmatprep.subr.mxu0 %v1153
        %1727 = vmatpush1.msra.mxu0 %v1152
        %1728 = vmatprep.subr.mxu0 %v1161
        %1729 = vmatpush1.msra.mxu0 %v1160
        %1730 = vmatprep.subr.mxu0 %v1169
        %1731 = vmatpush1.msra.mxu0 %v1168
        %1732 = vmatprep.subr.mxu0 %v1177
        %1733 = vmatpush1.msra.mxu0 %v1176
        %1734 = vmatprep.subr.mxu0 %v1185
        %1735 = vmatpush1.msra.mxu0 %v1184
        %1736 = vmatprep.subr.mxu0 %v1193
        %1737 = vmatpush1.msra.mxu0 %v1192
        %1738 = vmatprep.subr.mxu0 %v1201
        %1739 = vmatpush1.msra.mxu0 %v1200
        %1740 = vmatprep.subr.mxu0 %v1209
        %1741 = vmatpush1.msra.mxu0 %v1208
        %1742 = vmatprep.subr.mxu0 %v1217
        %1743 = vmatpush1.msra.mxu0 %v1216
        %1744 = vmatprep.subr.mxu0 %v1225
        %1745 = vmatpush1.msra.mxu0 %v1224
        %1746 = vmatprep.subr.mxu0 %v1233
        %1747 = vmatpush1.msra.mxu0 %v1232
        %1748 = vmatprep.subr.mxu0 %v1241
        %1749 = vmatpush1.msra.mxu0 %v1240
        %1750 = vmatprep.subr.mxu0 %v1249
        %1751 = vmatpush1.msra.mxu0 %v1248
        %1752 = vmatprep.subr.mxu0 %v1257
        %1753 = vmatpush1.msra.mxu0 %v1256
        %1754 = vmatprep.subr.mxu0 %v1265
        %1755 = vmatpush1.msra.mxu0 %v1264
        %1756 = vmatprep.subr.mxu0 %v1273
        %1757 = vmatpush1.msra.mxu0 %v1272
        %1758 = vmatprep.subr.mxu0 %v1281
        %1759 = vmatpush1.msra.mxu0 %v1280
        %1760 = vmatprep.subr.mxu0 %v1289
        %1761 = vmatpush1.msra.mxu0 %v1288
        %1762 = vmatprep.subr.mxu0 %v1297
        %1763 = vmatpush1.msra.mxu0 %v1296
        %1764 = vmatprep.subr.mxu0 %v1305
        %1765 = vmatpush1.msra.mxu0 %v1304
        %1766 = vmatprep.subr.mxu0 %v1313
        %1767 = vmatpush1.msra.mxu0 %v1312
        %1768 = vmatprep.subr.mxu0 %v1321
        %1769 = vmatpush1.msra.mxu0 %v1320
        %1770 = vmatprep.subr.mxu0 %v1329
        %1771 = vmatpush1.msra.mxu0 %v1328
        %1772 = vmatprep.subr.mxu0 %v1337
        %1773 = vmatpush1.msra.mxu0 %v1336
        %1774 = vmatprep.subr.mxu0 %v1345
        %1775 = vmatpush1.msra.mxu0 %v1344
        %1776 = vmatprep.subr.mxu0 %v1353
        %1777 = vmatpush1.msra.mxu0 %v1352
        %1778 = vmatprep.subr.mxu0 %v1361
        %1779 = vmatpush1.msra.mxu0 %v1360
        %1780 = vmatprep.subr.mxu0 %v1369
        %1781 = vmatpush1.msra.mxu0 %v1368
        %1782 = vmatprep.subr.mxu0 %v1377
        %1783 = vmatpush1.msra.mxu0 %v1376
        %1784 = vmatprep.subr.mxu0 %v1385
        %1785 = vmatpush1.msra.mxu0 %v1384
        %1786 = vmatprep.subr.mxu0 %v1393
        %1787 = vmatpush1.msra.mxu0 %v1392
        %1788 = vmatprep.mubr.f32.mxu0 %v1508
        %1789 = vmatmul.mubr.f32.gmra.mrb[0].mxu0 %v1505
        %v1790 = vpop.f32.mrb[0].mxu0
        %v1791 = vadd.f32 0.0, %v1790
        %v1792 = vpop.f32.mrb[0].mxu0
        %v1793 = vadd.f32 0.0, %v1792
        %1794 = vdwg.mxu0
        %v1803 = vrot.slane %v1578, 1
        %v1804 = vrot.slane %v1580, 1
        %v1805 = vrot.slane %v1649, 1
        %v1806 = vrot.slane %v1651, 1
        %v1807 = vrot.slane %v1720, 1
        %v1808 = vrot.slane %v1722, 1
        %v1809 = vrot.slane %v1791, 1
        %v1810 = vrot.slane %v1793, 1
        %v1819 = vadd.f32 %v1482, %v1803
        %v1820 = vadd.f32 %v1483, %v1804
        %v1821 = vadd.f32 %v1484, %v1805
        %v1822 = vadd.f32 %v1485, %v1806
        %v1823 = vadd.f32 %v1486, %v1807
        %v1824 = vadd.f32 %v1487, %v1808
        %v1825 = vadd.f32 %v1488, %v1809
        %v1826 = vadd.f32 %v1489, %v1810
        %v1827 = vadd.f32 %v1490, %v1803
        %v1828 = vadd.f32 %v1491, %v1804
        %v1829 = vadd.f32 %v1492, %v1805
        %v1830 = vadd.f32 %v1493, %v1806
        %v1831 = vadd.f32 %v1494, %v1807
        %v1832 = vadd.f32 %v1495, %v1808
        %v1833 = vadd.f32 %v1496, %v1809
        %v1834 = vadd.f32 %v1497, %v1810
        %v1835 = vmul.f32 %v1819, 0.5
        %v1836 = vmul.f32 %v1820, 0.5
        %v1837 = vmul.f32 %v1827, 0.5
        %v1838 = vmul.f32 %v1828, 0.5
        %v1839 = vtanh.pop %v1835
        %v1840 = vtanh.pop %v1836
        %v1841 = vtanh.pop %v1837
        %v1842 = vtanh.pop %v1838
        %v1843 = vadd.f32 %v1839, 1.0
        %v1844 = vadd.f32 %v1840, 1.0
        %v1845 = vadd.f32 %v1841, 1.0
        %v1846 = vadd.f32 %v1842, 1.0
        %v1847 = vmul.f32 %v1843, 0.5
        %v1848 = vmul.f32 %v1844, 0.5
        %v1849 = vmul.f32 %v1845, 0.5
        %v1850 = vmul.f32 %v1846, 0.5
        %v1851 = vmul.f32 %v1821, 0.5
        %v1852 = vmul.f32 %v1822, 0.5
        %v1853 = vmul.f32 %v1829, 0.5
        %v1854 = vmul.f32 %v1830, 0.5
        %v1855 = vtanh.pop %v1851
        %v1856 = vtanh.pop %v1852
        %v1857 = vtanh.pop %v1853
        %v1858 = vtanh.pop %v1854
        %v1859 = vadd.f32 %v1855, 1.0
        %v1860 = vadd.f32 %v1856, 1.0
        %v1861 = vadd.f32 %v1857, 1.0
        %v1862 = vadd.f32 %v1858, 1.0
        %v1863 = vmul.f32 %v1859, 0.5
        %v1864 = vmul.f32 %v1860, 0.5
        %v1865 = vmul.f32 %v1861, 0.5
        %v1866 = vmul.f32 %v1862, 0.5
        %v1867 = vtanh.pop %v1823
        %v1868 = vtanh.pop %v1824
        %v1869 = vtanh.pop %v1831
        %v1870 = vtanh.pop %v1832
        %v1871 = vmul.f32 %v1825, 0.5
        %v1872 = vmul.f32 %v1826, 0.5
        %v1873 = vmul.f32 %v1833, 0.5
        %v1874 = vmul.f32 %v1834, 0.5
        %v1875 = vtanh.pop %v1871
        %v1876 = vtanh.pop %v1872
        %v1877 = vtanh.pop %v1873
        %v1878 = vtanh.pop %v1874
        %v1879 = vadd.f32 %v1875, 1.0
        %v1880 = vadd.f32 %v1876, 1.0
        %v1881 = vadd.f32 %v1877, 1.0
        %v1882 = vadd.f32 %v1878, 1.0
        %v1883 = vmul.f32 %v1879, 0.5
        %v1884 = vmul.f32 %v1880, 0.5
        %v1885 = vmul.f32 %v1881, 0.5
        %v1886 = vmul.f32 %v1882, 0.5
        %vm1891 = vcmask 1040384
        %v1892 = vrot.slane %v1470, 7
        %v1893 = vrot.slane %v1471, 7
        %v1894 = vrot.slane %v1472, 7
        %v1895 = vsel %vm1891, %v1892, %v1894
        %v1896 = vrot.slane %v1473, 7
        %v1897 = vsel %vm1891, %v1893, %v1896
        %v1902 = vmul.f32 %v1863, %v1892
        %v1903 = vmul.f32 %v1864, %v1893
        %v1904 = vmul.f32 %v1865, %v1895
        %v1905 = vmul.f32 %v1866, %v1897
        %v1906 = vmul.f32 %v1847, %v1867
        %v1907 = vmul.f32 %v1848, %v1868
        %v1908 = vmul.f32 %v1849, %v1869
        %v1909 = vmul.f32 %v1850, %v1870
        %v1910 = vadd.f32 %v1902, %v1906
        %v1911 = vadd.f32 %v1903, %v1907
        %v1912 = vadd.f32 %v1904, %v1908
        %v1913 = vadd.f32 %v1905, %v1909
        %v1914 = vtanh.pop %v1910
        %v1915 = vtanh.pop %v1911
        %v1916 = vtanh.pop %v1912
        %v1917 = vtanh.pop %v1913
        %v1918 = vmul.f32 %v1883, %v1914
        %v1919 = vmul.f32 %v1884, %v1915
        %v1920 = vmul.f32 %v1885, %v1916
        %v1921 = vmul.f32 %v1886, %v1917
        %v1922 = vld [vmem:[#allocation2 + $0x40] sm:$0xff]
        %v1923 = vld [vmem:[#allocation2 + $0x48] sm:$0xff]
        %v1924 = vld [vmem:[#allocation2 + $0x50] sm:$0xff]
        %v1925 = vld [vmem:[#allocation2 + $0x58] sm:$0xff]
        %v1926 = vld [vmem:[#allocation2 + $0x60] sm:$0xff]
        %v1927 = vld [vmem:[#allocation2 + $0x68] sm:$0xff]
        %v1928 = vld [vmem:[#allocation2 + $0x70] sm:$0xff]
        %v1929 = vld [vmem:[#allocation2 + $0x78] sm:$0xff]
        %v1934 = vrot.slane %v1918, 7
        %v1935 = vrot.slane %v1920, 7
        %v1936 = vsel %vm1891, %v1934, %v1935
        %v1937 = vrot.slane %v1919, 7
        %v1938 = vrot.slane %v1921, 7
        %v1939 = vsel %vm1891, %v1937, %v1938
        %1942 = vmatprep.subr.mxu0 %v1139
        %1943 = vmatpush1.msra.mxu0 %v1138
        %1944 = vmatprep.subr.mxu0 %v1147
        %1945 = vmatpush1.msra.mxu0 %v1146
        %1946 = vmatprep.subr.mxu0 %v1155
        %1947 = vmatpush1.msra.mxu0 %v1154
        %1948 = vmatprep.subr.mxu0 %v1163
        %1949 = vmatpush1.msra.mxu0 %v1162
        %1950 = vmatprep.subr.mxu0 %v1171
        %1951 = vmatpush1.msra.mxu0 %v1170
        %1952 = vmatprep.subr.mxu0 %v1179
        %1953 = vmatpush1.msra.mxu0 %v1178
        %1954 = vmatprep.subr.mxu0 %v1187
        %1955 = vmatpush1.msra.mxu0 %v1186
        %1956 = vmatprep.subr.mxu0 %v1195
        %1957 = vmatpush1.msra.mxu0 %v1194
        %1958 = vmatprep.subr.mxu0 %v1203
        %1959 = vmatpush1.msra.mxu0 %v1202
        %1960 = vmatprep.subr.mxu0 %v1211
        %1961 = vmatpush1.msra.mxu0 %v1210
        %1962 = vmatprep.subr.mxu0 %v1219
        %1963 = vmatpush1.msra.mxu0 %v1218
        %1964 = vmatprep.subr.mxu0 %v1227
        %1965 = vmatpush1.msra.mxu0 %v1226
        %1966 = vmatprep.subr.mxu0 %v1235
        %1967 = vmatpush1.msra.mxu0 %v1234
        %1968 = vmatprep.subr.mxu0 %v1243
        %1969 = vmatpush1.msra.mxu0 %v1242
        %1970 = vmatprep.subr.mxu0 %v1251
        %1971 = vmatpush1.msra.mxu0 %v1250
        %1972 = vmatprep.subr.mxu0 %v1259
        %1973 = vmatpush1.msra.mxu0 %v1258
        %1974 = vmatprep.subr.mxu0 %v1267
        %1975 = vmatpush1.msra.mxu0 %v1266
        %1976 = vmatprep.subr.mxu0 %v1275
        %1977 = vmatpush1.msra.mxu0 %v1274
        %1978 = vmatprep.subr.mxu0 %v1283
        %1979 = vmatpush1.msra.mxu0 %v1282
        %1980 = vmatprep.subr.mxu0 %v1291
        %1981 = vmatpush1.msra.mxu0 %v1290
        %1982 = vmatprep.subr.mxu0 %v1299
        %1983 = vmatpush1.msra.mxu0 %v1298
        %1984 = vmatprep.subr.mxu0 %v1307
        %1985 = vmatpush1.msra.mxu0 %v1306
        %1986 = vmatprep.subr.mxu0 %v1315
        %1987 = vmatpush1.msra.mxu0 %v1314
        %1988 = vmatprep.subr.mxu0 %v1323
        %1989 = vmatpush1.msra.mxu0 %v1322
        %1990 = vmatprep.subr.mxu0 %v1331
        %1991 = vmatpush1.msra.mxu0 %v1330
        %1992 = vmatprep.subr.mxu0 %v1339
        %1993 = vmatpush1.msra.mxu0 %v1338
        %1994 = vmatprep.subr.mxu0 %v1347
        %1995 = vmatpush1.msra.mxu0 %v1346
        %1996 = vmatprep.subr.mxu0 %v1355
        %1997 = vmatpush1.msra.mxu0 %v1354
        %1998 = vmatprep.subr.mxu0 %v1363
        %1999 = vmatpush1.msra.mxu0 %v1362
        %2000 = vmatprep.subr.mxu0 %v1371
        %2001 = vmatpush1.msra.mxu0 %v1370
        %2002 = vmatprep.subr.mxu0 %v1379
        %2003 = vmatpush1.msra.mxu0 %v1378
        %2004 = vmatprep.subr.mxu0 %v1387
        %2005 = vmatpush1.msra.mxu0 %v1386
        %2006 = vmatprep.mubr.f32.mxu0 %v1939
        %2007 = vmatmul.mubr.f32.gmra.mrb[0].mxu0 %v1936
        %v2008 = vpop.f32.mrb[0].mxu0
        %v2009 = vadd.f32 0.0, %v2008
        %v2010 = vpop.f32.mrb[0].mxu0
        %v2011 = vadd.f32 0.0, %v2010
        %2012 = vdwg.mxu0
        %2013 = vmatprep.subr.mxu0 %v1141
        %2014 = vmatpush1.msra.mxu0 %v1140
        %2015 = vmatprep.subr.mxu0 %v1149
        %2016 = vmatpush1.msra.mxu0 %v1148
        %2017 = vmatprep.subr.mxu0 %v1157
        %2018 = vmatpush1.msra.mxu0 %v1156
        %2019 = vmatprep.subr.mxu0 %v1165
        %2020 = vmatpush1.msra.mxu0 %v1164
        %2021 = vmatprep.subr.mxu0 %v1173
        %2022 = vmatpush1.msra.mxu0 %v1172
        %2023 = vmatprep.subr.mxu0 %v1181
        %2024 = vmatpush1.msra.mxu0 %v1180
        %2025 = vmatprep.subr.mxu0 %v1189
        %2026 = vmatpush1.msra.mxu0 %v1188
        %2027 = vmatprep.subr.mxu0 %v1197
        %2028 = vmatpush1.msra.mxu0 %v1196
        %2029 = vmatprep.subr.mxu0 %v1205
        %2030 = vmatpush1.msra.mxu0 %v1204
        %2031 = vmatprep.subr.mxu0 %v1213
        %2032 = vmatpush1.msra.mxu0 %v1212
        %2033 = vmatprep.subr.mxu0 %v1221
        %2034 = vmatpush1.msra.mxu0 %v1220
        %2035 = vmatprep.subr.mxu0 %v1229
        %2036 = vmatpush1.msra.mxu0 %v1228
        %2037 = vmatprep.subr.mxu0 %v1237
        %2038 = vmatpush1.msra.mxu0 %v1236
        %2039 = vmatprep.subr.mxu0 %v1245
        %2040 = vmatpush1.msra.mxu0 %v1244
        %2041 = vmatprep.subr.mxu0 %v1253
        %2042 = vmatpush1.msra.mxu0 %v1252
        %2043 = vmatprep.subr.mxu0 %v1261
        %2044 = vmatpush1.msra.mxu0 %v1260
        %2045 = vmatprep.subr.mxu0 %v1269
        %2046 = vmatpush1.msra.mxu0 %v1268
        %2047 = vmatprep.subr.mxu0 %v1277
        %2048 = vmatpush1.msra.mxu0 %v1276
        %2049 = vmatprep.subr.mxu0 %v1285
        %2050 = vmatpush1.msra.mxu0 %v1284
        %2051 = vmatprep.subr.mxu0 %v1293
        %2052 = vmatpush1.msra.mxu0 %v1292
        %2053 = vmatprep.subr.mxu0 %v1301
        %2054 = vmatpush1.msra.mxu0 %v1300
        %2055 = vmatprep.subr.mxu0 %v1309
        %2056 = vmatpush1.msra.mxu0 %v1308
        %2057 = vmatprep.subr.mxu0 %v1317
        %2058 = vmatpush1.msra.mxu0 %v1316
        %2059 = vmatprep.subr.mxu0 %v1325
        %2060 = vmatpush1.msra.mxu0 %v1324
        %2061 = vmatprep.subr.mxu0 %v1333
        %2062 = vmatpush1.msra.mxu0 %v1332
        %2063 = vmatprep.subr.mxu0 %v1341
        %2064 = vmatpush1.msra.mxu0 %v1340
        %2065 = vmatprep.subr.mxu0 %v1349
        %2066 = vmatpush1.msra.mxu0 %v1348
        %2067 = vmatprep.subr.mxu0 %v1357
        %2068 = vmatpush1.msra.mxu0 %v1356
        %2069 = vmatprep.subr.mxu0 %v1365
        %2070 = vmatpush1.msra.mxu0 %v1364
        %2071 = vmatprep.subr.mxu0 %v1373
        %2072 = vmatpush1.msra.mxu0 %v1372
        %2073 = vmatprep.subr.mxu0 %v1381
        %2074 = vmatpush1.msra.mxu0 %v1380
        %2075 = vmatprep.subr.mxu0 %v1389
        %2076 = vmatpush1.msra.mxu0 %v1388
        %2077 = vmatprep.mubr.f32.mxu0 %v1939
        %2078 = vmatmul.mubr.f32.gmra.mrb[0].mxu0 %v1936
        %v2079 = vpop.f32.mrb[0].mxu0
        %v2080 = vadd.f32 0.0, %v2079
        %v2081 = vpop.f32.mrb[0].mxu0
        %v2082 = vadd.f32 0.0, %v2081
        %2083 = vdwg.mxu0
        %2084 = vmatprep.subr.mxu0 %v1143
        %2085 = vmatpush1.msra.mxu0 %v1142
        %2086 = vmatprep.subr.mxu0 %v1151
        %2087 = vmatpush1.msra.mxu0 %v1150
        %2088 = vmatprep.subr.mxu0 %v1159
        %2089 = vmatpush1.msra.mxu0 %v1158
        %2090 = vmatprep.subr.mxu0 %v1167
        %2091 = vmatpush1.msra.mxu0 %v1166
        %2092 = vmatprep.subr.mxu0 %v1175
        %2093 = vmatpush1.msra.mxu0 %v1174
        %2094 = vmatprep.subr.mxu0 %v1183
        %2095 = vmatpush1.msra.mxu0 %v1182
        %2096 = vmatprep.subr.mxu0 %v1191
        %2097 = vmatpush1.msra.mxu0 %v1190
        %2098 = vmatprep.subr.mxu0 %v1199
        %2099 = vmatpush1.msra.mxu0 %v1198
        %2100 = vmatprep.subr.mxu0 %v1207
        %2101 = vmatpush1.msra.mxu0 %v1206
        %2102 = vmatprep.subr.mxu0 %v1215
        %2103 = vmatpush1.msra.mxu0 %v1214
        %2104 = vmatprep.subr.mxu0 %v1223
        %2105 = vmatpush1.msra.mxu0 %v1222
        %2106 = vmatprep.subr.mxu0 %v1231
        %2107 = vmatpush1.msra.mxu0 %v1230
        %2108 = vmatprep.subr.mxu0 %v1239
        %2109 = vmatpush1.msra.mxu0 %v1238
        %2110 = vmatprep.subr.mxu0 %v1247
        %2111 = vmatpush1.msra.mxu0 %v1246
        %2112 = vmatprep.subr.mxu0 %v1255
        %2113 = vmatpush1.msra.mxu0 %v1254
        %2114 = vmatprep.subr.mxu0 %v1263
        %2115 = vmatpush1.msra.mxu0 %v1262
        %2116 = vmatprep.subr.mxu0 %v1271
        %2117 = vmatpush1.msra.mxu0 %v1270
        %2118 = vmatprep.subr.mxu0 %v1279
        %2119 = vmatpush1.msra.mxu0 %v1278
        %2120 = vmatprep.subr.mxu0 %v1287
        %2121 = vmatpush1.msra.mxu0 %v1286
        %2122 = vmatprep.subr.mxu0 %v1295
        %2123 = vmatpush1.msra.mxu0 %v1294
        %2124 = vmatprep.subr.mxu0 %v1303
        %2125 = vmatpush1.msra.mxu0 %v1302
        %2126 = vmatprep.subr.mxu0 %v1311
        %2127 = vmatpush1.msra.mxu0 %v1310
        %2128 = vmatprep.subr.mxu0 %v1319
        %2129 = vmatpush1.msra.mxu0 %v1318
        %2130 = vmatprep.subr.mxu0 %v1327
        %2131 = vmatpush1.msra.mxu0 %v1326
        %2132 = vmatprep.subr.mxu0 %v1335
        %2133 = vmatpush1.msra.mxu0 %v1334
        %2134 = vmatprep.subr.mxu0 %v1343
        %2135 = vmatpush1.msra.mxu0 %v1342
        %2136 = vmatprep.subr.mxu0 %v1351
        %2137 = vmatpush1.msra.mxu0 %v1350
        %2138 = vmatprep.subr.mxu0 %v1359
        %2139 = vmatpush1.msra.mxu0 %v1358
        %2140 = vmatprep.subr.mxu0 %v1367
        %2141 = vmatpush1.msra.mxu0 %v1366
        %2142 = vmatprep.subr.mxu0 %v1375
        %2143 = vmatpush1.msra.mxu0 %v1374
        %2144 = vmatprep.subr.mxu0 %v1383
        %2145 = vmatpush1.msra.mxu0 %v1382
        %2146 = vmatprep.subr.mxu0 %v1391
        %2147 = vmatpush1.msra.mxu0 %v1390
        %2148 = vmatprep.mubr.f32.mxu0 %v1939
        %2149 = vmatmul.mubr.f32.gmra.mrb[0].mxu0 %v1936
        %v2150 = vpop.f32.mrb[0].mxu0
        %v2151 = vadd.f32 0.0, %v2150
        %v2152 = vpop.f32.mrb[0].mxu0
        %v2153 = vadd.f32 0.0, %v2152
        %2154 = vdwg.mxu0
        %2155 = vmatprep.subr.mxu0 %v1145
        %2156 = vmatpush1.msra.mxu0 %v1144
        %2157 = vmatprep.subr.mxu0 %v1153
        %2158 = vmatpush1.msra.mxu0 %v1152
        %2159 = vmatprep.subr.mxu0 %v1161
        %2160 = vmatpush1.msra.mxu0 %v1160
        %2161 = vmatprep.subr.mxu0 %v1169
        %2162 = vmatpush1.msra.mxu0 %v1168
        %2163 = vmatprep.subr.mxu0 %v1177
        %2164 = vmatpush1.msra.mxu0 %v1176
        %2165 = vmatprep.subr.mxu0 %v1185
        %2166 = vmatpush1.msra.mxu0 %v1184
        %2167 = vmatprep.subr.mxu0 %v1193
        %2168 = vmatpush1.msra.mxu0 %v1192
        %2169 = vmatprep.subr.mxu0 %v1201
        %2170 = vmatpush1.msra.mxu0 %v1200
        %2171 = vmatprep.subr.mxu0 %v1209
        %2172 = vmatpush1.msra.mxu0 %v1208
        %2173 = vmatprep.subr.mxu0 %v1217
        %2174 = vmatpush1.msra.mxu0 %v1216
        %2175 = vmatprep.subr.mxu0 %v1225
        %2176 = vmatpush1.msra.mxu0 %v1224
        %2177 = vmatprep.subr.mxu0 %v1233
        %2178 = vmatpush1.msra.mxu0 %v1232
        %2179 = vmatprep.subr.mxu0 %v1241
        %2180 = vmatpush1.msra.mxu0 %v1240
        %2181 = vmatprep.subr.mxu0 %v1249
        %2182 = vmatpush1.msra.mxu0 %v1248
        %2183 = vmatprep.subr.mxu0 %v1257
        %2184 = vmatpush1.msra.mxu0 %v1256
        %2185 = vmatprep.subr.mxu0 %v1265
        %2186 = vmatpush1.msra.mxu0 %v1264
        %2187 = vmatprep.subr.mxu0 %v1273
        %2188 = vmatpush1.msra.mxu0 %v1272
        %2189 = vmatprep.subr.mxu0 %v1281
        %2190 = vmatpush1.msra.mxu0 %v1280
        %2191 = vmatprep.subr.mxu0 %v1289
        %2192 = vmatpush1.msra.mxu0 %v1288
        %2193 = vmatprep.subr.mxu0 %v1297
        %2194 = vmatpush1.msra.mxu0 %v1296
        %2195 = vmatprep.subr.mxu0 %v1305
        %2196 = vmatpush1.msra.mxu0 %v1304
        %2197 = vmatprep.subr.mxu0 %v1313
        %2198 = vmatpush1.msra.mxu0 %v1312
        %2199 = vmatprep.subr.mxu0 %v1321
        %2200 = vmatpush1.msra.mxu0 %v1320
        %2201 = vmatprep.subr.mxu0 %v1329
        %2202 = vmatpush1.msra.mxu0 %v1328
        %2203 = vmatprep.subr.mxu0 %v1337
        %2204 = vmatpush1.msra.mxu0 %v1336
        %2205 = vmatprep.subr.mxu0 %v1345
        %2206 = vmatpush1.msra.mxu0 %v1344
        %2207 = vmatprep.subr.mxu0 %v1353
        %2208 = vmatpush1.msra.mxu0 %v1352
        %2209 = vmatprep.subr.mxu0 %v1361
        %2210 = vmatpush1.msra.mxu0 %v1360
        %2211 = vmatprep.subr.mxu0 %v1369
        %2212 = vmatpush1.msra.mxu0 %v1368
        %2213 = vmatprep.subr.mxu0 %v1377
        %2214 = vmatpush1.msra.mxu0 %v1376
        %2215 = vmatprep.subr.mxu0 %v1385
        %2216 = vmatpush1.msra.mxu0 %v1384
        %2217 = vmatprep.subr.mxu0 %v1393
        %2218 = vmatpush1.msra.mxu0 %v1392
        %2219 = vmatprep.mubr.f32.mxu0 %v1939
        %2220 = vmatmul.mubr.f32.gmra.mrb[0].mxu0 %v1936
        %v2221 = vpop.f32.mrb[0].mxu0
        %v2222 = vadd.f32 0.0, %v2221
        %v2223 = vpop.f32.mrb[0].mxu0
        %v2224 = vadd.f32 0.0, %v2223
        %2225 = vdwg.mxu0
        %v2226 = vadd.f32 %v1922, %v2009
        %v2227 = vadd.f32 %v1923, %v2011
        %v2228 = vadd.f32 %v1924, %v2080
        %v2229 = vadd.f32 %v1925, %v2082
        %v2230 = vadd.f32 %v1926, %v2151
        %v2231 = vadd.f32 %v1927, %v2153
        %v2232 = vadd.f32 %v1928, %v2222
        %v2233 = vadd.f32 %v1929, %v2224
        %v2234 = vmul.f32 %v2226, 0.5
        %v2235 = vmul.f32 %v2227, 0.5
        %v2236 = vtanh.pop %v2234
        %v2237 = vtanh.pop %v2235
        %v2238 = vadd.f32 %v2236, 1.0
        %v2239 = vadd.f32 %v2237, 1.0
        %v2240 = vmul.f32 %v2238, 0.5
        %v2241 = vmul.f32 %v2239, 0.5
        %v2242 = vmul.f32 %v2228, 0.5
        %v2243 = vmul.f32 %v2229, 0.5
        %v2244 = vtanh.pop %v2242
        %v2245 = vtanh.pop %v2243
        %v2246 = vadd.f32 %v2244, 1.0
        %v2247 = vadd.f32 %v2245, 1.0
        %v2248 = vmul.f32 %v2246, 0.5
        %v2249 = vmul.f32 %v2247, 0.5
        %v2250 = vtanh.pop %v2230
        %v2251 = vtanh.pop %v2231
        %v2252 = vmul.f32 %v2232, 0.5
        %v2253 = vmul.f32 %v2233, 0.5
        %v2254 = vtanh.pop %v2252
        %v2255 = vtanh.pop %v2253
        %v2256 = vadd.f32 %v2254, 1.0
        %v2257 = vadd.f32 %v2255, 1.0
        %v2258 = vmul.f32 %v2256, 0.5
        %v2259 = vmul.f32 %v2257, 0.5
        %v2264 = vrot.slane %v1910, 7
        %v2265 = vrot.slane %v1912, 7
        %v2266 = vsel %vm1891, %v2264, %v2265
        %v2267 = vrot.slane %v1911, 7
        %v2268 = vrot.slane %v1913, 7
        %v2269 = vsel %vm1891, %v2267, %v2268
        %v2272 = vmul.f32 %v2248, %v2266
        %v2273 = vmul.f32 %v2249, %v2269
        %v2274 = vmul.f32 %v2240, %v2250
        %v2275 = vmul.f32 %v2241, %v2251
        %v2276 = vadd.f32 %v2272, %v2274
        %v2277 = vadd.f32 %v2273, %v2275
        %v2278 = vtanh.pop %v2276
        %v2279 = vtanh.pop %v2277
        %v2280 = vmul.f32 %v2258, %v2278
        %v2281 = vmul.f32 %v2259, %v2279
        %v2282 = vadd.f32 %v366, %v2280
        %v2283 = vadd.f32 %v367, %v2281
        %2284 = vst [vmem:[%s365] sm:$0xff] %v2282
        %2285 = vst [vmem:[%s365 + $0x8] sm:$0xff] %v2283
        %s2286 = sand.u32 %s208, 1
        %s2287 = scalar_lea.sflag [#allocation5], %s2286
        %s2288 = sand.u32 %s208, 1
        %s2289 = smul.addr %s2288, 16
        %s2290 = scalar_lea.vmem [#allocation11], %s2289
        // Predicated region
        $region69: #{tpu_custom_call.1} parent=51 // pred_check
          %p2291 = pneg %p218
        $region70: #{tpu_custom_call.1} parent=51 // pred_check_branch
          %2293 = sbr.rel (%p2291) target = $region72
        $region71: #{tpu_custom_call.1} parent=51 // pred_region
          %s2295 = ssub.s32 256, 256
          %2296 = vsyncadd %s2287, %s2295
          %s2297 = smul.addr %s27, 2
          %s2298 = smul.addr %s2297, 128
          %s2299 = scalar_lea.hbm %s8, %s2298
          %s2301 = sshll.u32 %s2290, 4
          %s2302 = int_to_ptr.vmem [resolvable:$true] %s2301
          %2304 = dma.vmem_to_hbm [thread:$0]  %s2302, 256, %s2299, %s2287
        $region72: #{tpu_custom_call.1} parent=51 // pred_fallthru
          _
      $region52: #{tpu_custom_call.1} parent=5 // pred_fallthru
        _
      %p2305 = scmp.le.s32.totalorder 2, %s22
      // Predicated region
      $region73: #{tpu_custom_call.1} parent=5 // pred_check
        %p2306 = pneg %p2305
      $region74: #{tpu_custom_call.1} parent=5 // pred_check_branch
        %2308 = sbr.rel (%p2306) target = $region76
      $region75: #{tpu_custom_call.1} parent=5 // pred_region
        %s2309 = ssub.s32 %s22, 2
        // Predicated region
        $region77: #{tpu_custom_call.1} parent=75 // pred_check
          %p2310 = pneg %p224
        $region78: #{tpu_custom_call.1} parent=75 // pred_check_branch
          %2312 = sbr.rel (%p2310) target = $region80
        $region79: #{tpu_custom_call.1} parent=75 // pred_region
          %s2313 = sand.u32 %s209, 1
          %s2314 = scalar_lea.sflag [#allocation5], %s2313
          %s2315 = sand.u32 %s209, 1
          %s2316 = smul.addr %s2315, 16
          %s2317 = scalar_lea.vmem [#allocation11], %s2316
          %2318 = dma.done %s2314, 256
        $region80: #{tpu_custom_call.1} parent=75 // pred_fallthru
          _
      $region76: #{tpu_custom_call.1} parent=5 // pred_fallthru
        _
    $region6: #{tpu_custom_call.1} parent=1 // loop_footer
      %s26 = sadd.s32 1, %s22
    $region7: #{tpu_custom_call.1} parent=1 // loop_footer_branch
      %21 = sbr.rel target = $region3
    $region8: #{tpu_custom_call.1} parent=1 // loop_exit
      _
    %2319 = vsyncpa [#allocation4], 1
    %s2320 = scalar_lea.sflag [#allocation4], 1
    %2321 = vsyncpa %s2320, 1
    %2322 = vsyncpa [#allocation7], 1
    %2323 = vsyncpa [#allocation10], 1
    %2324 = vsyncpa [#allocation5], 1
    %s2325 = scalar_lea.sflag [#allocation5], 1
    %2326 = vsyncpa %s2325, 1

</llo_original>
